<compile_context>
chip_gen: v7x
topology: tpu7x:2x2x1
jax: 0.10.0
libtpu: 0.0.40
codegen_flags: <defaults>
</compile_context>

<pallas_src>
import functools
import math

import jax
import jax.numpy as jnp
import numpy as np
from jax.experimental import pallas as pl
from jax.experimental.pallas import tpu as pltpu


def mha_kernel(lens_ref,                      # scalar-prefetch: (B,) int32 in SMEM
               xq_ref, xk_ref, xv_ref,        # (block_b, S, D) f32
               wq_ref, wk_ref, wv_ref,        # (D, D) bf16
               vecs_ref,                      # (8, D) f32: bq,bk,bv,gamma,beta,0,0,0
               out_ref,                       # (block_b, S, D) f32
               *, num_heads, eps, causal, block_b, seq_len, d_model, approx_recip):
    S, D, H = seq_len, d_model, num_heads
    dh = D // H
    scale = 1.0 / math.sqrt(dh)

    bq = vecs_ref[0:1, :]
    bk = vecs_ref[1:2, :]
    bv = vecs_ref[2:3, :]
    gamma = vecs_ref[3:4, :]
    beta = vecs_ref[4:5, :]

    # ---- Q/K/V projections with ReLU (nn.Sequential(Linear, ReLU)) ----------
    # Flatten the batch tile so each projection is one tall (block_b*S, D) @ (D, D)
    # matmul (amortizes MXU fill); bf16 operands, f32 accumulation.
    xq3 = xq_ref[...]                                   # kept in f32 for the residual
    xq2 = xq3.reshape(block_b * S, D)
    xk2 = xk_ref[...].reshape(block_b * S, D)
    xv2 = xv_ref[...].reshape(block_b * S, D)

    q = jnp.maximum(jnp.dot(xq2.astype(jnp.bfloat16), wq_ref[...],
                            preferred_element_type=jnp.float32) + bq, 0.0)
    k = jnp.maximum(jnp.dot(xk2.astype(jnp.bfloat16), wk_ref[...],
                            preferred_element_type=jnp.float32) + bk, 0.0)
    v = jnp.maximum(jnp.dot(xv2.astype(jnp.bfloat16), wv_ref[...],
                            preferred_element_type=jnp.float32) + bv, 0.0)
    # TODO(synk): when keys is values (typical enc-dec call) fuse Wk/Wv into a single
    # (D, 2D) bf16 weight and one matmul to widen the MXU N dimension.

    # Fold 1/sqrt(dh) into q in f32 (v5e: no bf16 VALU); cast at the matmul boundary.
    q3 = (q * scale).reshape(block_b, S, D)
    k3 = k.reshape(block_b, S, D)
    v3 = v.reshape(block_b, S, D)
    kb = k3.astype(jnp.bfloat16)

    # ---- additive attention mask, built once per grid step (batched) --------
    b0 = pl.program_id(0)
    col_ids = jax.lax.broadcasted_iota(jnp.int32, (block_b, S, S), 2)
    batch_ids = jax.lax.broadcasted_iota(jnp.int32, (block_b, 1, 1), 0)
    valid = jnp.zeros((block_b, 1, 1), jnp.int32)
    for bi in range(block_b):                 # tiny scalar loop: SMEM reads only
        valid = jnp.where(batch_ids == bi, lens_ref[b0 * block_b + bi], valid)
    pad = col_ids >= valid                    # key-padding mask (block_b, S, S)
    if causal:
        row_ids = jax.lax.broadcasted_iota(jnp.int32, (block_b, S, S), 1)
        causal_bias = jnp.where(col_ids > row_ids, -2.0 ** 32 + 1.0, 0.0)
    else:
        causal_bias = jnp.zeros((), jnp.float32)
    # masked_fill(-1e9) folded into a single additive mask; identical after softmax
    # for any row with >= 1 unmasked key (exp underflows to 0 either way).
    add_mask = jnp.where(pad, -1.0e9, causal_bias)

    # ---- per-head attention, batched over block_b ----------------------------
    # Heads are selected with per-head lane (column) masks: QK^T contracts the full
    # D axis of lane-masked q against k, and P @ (lane-masked V) accumulates each
    # head's output directly into its lane range (no dh=32 slicing, no final concat).
    # TODO(synk): for D > 128 this full-D contraction wastes H x MXU flops; switch to
    # a per-head dh contraction (reshape to (H, S, dh)) or 128-lane head groups.
    lane_ids = jax.lax.broadcasted_iota(jnp.int32, (1, 1, D), 2)
    acc = jnp.zeros((block_b, S, D), jnp.float32)
    for h in range(H):
        hm = jnp.logical_and(lane_ids >= h * dh, lane_ids < (h + 1) * dh)
        qh = jnp.where(hm, q3, 0.0).astype(jnp.bfloat16)     # mask in f32, cast last
        vh = jnp.where(hm, v3, 0.0).astype(jnp.bfloat16)
        s = jnp.einsum('bqd,bkd->bqk', qh, kb,
                       preferred_element_type=jnp.float32)   # (block_b, S, S)
        s = s + add_mask
        s = s - jnp.max(s, axis=-1, keepdims=True)           # f32 softmax
        p = jnp.exp(s)
        denom = jnp.sum(p, axis=-1, keepdims=True)
        if approx_recip:
            p = p * pl.reciprocal(denom, approx=True)        # EUP slot (~free)
        else:
            p = p / denom
        acc = acc + jnp.einsum('bqk,bkd->bqd', p.astype(jnp.bfloat16), vh,
                               preferred_element_type=jnp.float32)
    # TODO(synk): for long S, tile keys with an online-softmax (flash-style) loop
    # instead of materializing the full (block_b, S, S) score tensor.

    # TODO(synk): dropout is identity here (eval semantics); training-mode RNG
    # dropout not implemented.
    res = acc + xq3                                          # residual: a += queries

    # LayerNorm over d_model (affine, eps=1e-5), statistics in f32; one lane-dense
    # (block_b, S, D) store of the whole tile.
    mean = jnp.mean(res, axis=-1, keepdims=True)
    var = jnp.mean((res - mean) ** 2, axis=-1, keepdims=True)
    normed = (res - mean) * jax.lax.rsqrt(var + eps)
    out_ref[...] = normed * gamma + beta


def _vmem_capacity_bytes():
    try:
        info = pltpu.get_tpu_info()
        cap = getattr(info, "vmem_capacity_bytes", None)
        if cap:
            return int(cap)
    except Exception:
        pass
    return 64 * 1024 * 1024          # conservative fallback: v7x per-TensorCore VMEM


def _choose_block_b(B, S, D, vmem_budget):
    """Largest batch tile that (a) keeps >= min(B, 4) pipelined grid steps (>= 2 per
    v7x TensorCore under 'parallel'; DMA overlap on single-TC v5e/v6e) and (b) fits
    the VMEM budget (double-buffered I/O tiles + weights + in-kernel live values)."""
    fixed = 2 * (3 * D * D * 2 + 8 * D * 4)          # bf16 weights + vecs, x2 buffers
    per_b = 32 * S * D + 30 * S * D + 16 * S * S     # I/O (x2 bufs) + f32/bf16 interm.
    target_steps = min(B, 4)
    block_b = 1
    for bb in range(1, B + 1):
        if B % bb:
            continue
        if B // bb < target_steps:
            break                                    # bb ascending: fewer steps only
        if fixed + bb * per_b <= vmem_budget:
            block_b = bb
    return block_b


def multi_head_attention(queries, keys, values, lens, params, *, num_heads,
                         mask=False, block_b=None, approx_recip=True):
    """lens: (B,) int32 valid key lengths (padding mask is built in-kernel).
    mask=True additionally applies the causal (1 - tril) * (-2^32 + 1) bias.
    approx_recip=False gives an exact softmax reciprocal (bit-closer to PyTorch)."""
    B, S, D = queries.shape
    assert D % num_heads == 0

    vmem_cap = _vmem_capacity_bytes()
    vmem_budget = (vmem_cap * 3) // 4                # headroom for compiler scratch
    if block_b is None:
        block_b = _choose_block_b(B, S, D, vmem_budget)
    assert B % block_b == 0
    grid_b = B // block_b

    wq, bq, wk, bk, wv, bv, gamma, beta = params
    # Weights in bf16 (MXU-native, halves weight DMA bytes); f32 accumulation in-kernel.
    wq_bf = wq.astype(jnp.bfloat16)
    wk_bf = wk.astype(jnp.bfloat16)
    wv_bf = wv.astype(jnp.bfloat16)
    # Stack the five (1, D) vectors into one (8, D) f32 block: 1 DMA instead of 5.
    vecs = jnp.concatenate(
        [bq, bk, bv, gamma, beta, jnp.zeros((3, D), jnp.float32)], axis=0)

    kernel = functools.partial(
        mha_kernel, num_heads=num_heads, eps=1e-5, causal=mask,
        block_b=block_b, seq_len=S, d_model=D, approx_recip=approx_recip)

    batched = pl.BlockSpec((block_b, S, D), lambda b, lens: (b, 0, 0))
    w_spec = pl.BlockSpec((D, D), lambda b, lens: (0, 0))
    v_spec = pl.BlockSpec((8, D), lambda b, lens: (0, 0))

    return pl.pallas_call(
        kernel,
        out_shape=jax.ShapeDtypeStruct((B, S, D), jnp.float32),
        grid_spec=pltpu.PrefetchScalarGridSpec(
            num_scalar_prefetch=1,
            grid=(grid_b,),
            in_specs=[batched, batched, batched,     # xq, xk, xv
                      w_spec, w_spec, w_spec,        # Wq, Wk, Wv (bf16)
                      v_spec],                       # stacked bq/bk/bv/gamma/beta
            out_specs=batched,
        ),
        compiler_params=pltpu.CompilerParams(
            dimension_semantics=("parallel",),
            vmem_limit_bytes=vmem_budget),
    )(lens.astype(jnp.int32), queries, keys, values, wq_bf, wk_bf, wv_bf, vecs)


def reference_mha(queries, keys, values, params, *, num_heads, key_padding_mask,
                  causal):
    """Pure-JAX f32 reference mirroring the PyTorch forward (eval mode)."""
    wq, bq, wk, bk, wv, bv, gamma, beta = params
    B, S, D = queries.shape
    dh = D // num_heads
    q = jax.nn.relu(queries @ wq + bq)
    k = jax.nn.relu(keys @ wk + bk)
    v = jax.nn.relu(values @ wv + bv)
    q_ = jnp.stack(jnp.split(q, num_heads, axis=-1), axis=1)   # (B,H,S,dh)
    k_ = jnp.stack(jnp.split(k, num_heads, axis=-1), axis=1)
    v_ = jnp.stack(jnp.split(v, num_heads, axis=-1), axis=1)
    a = jnp.einsum('bhqd,bhkd->bhqk', q_, k_) / math.sqrt(dh)
    if causal:
        tri = jnp.tril(jnp.ones((S, S), jnp.float32))
        a = a + ((1.0 - tri) * (-2.0 ** 32 + 1.0))[None, None]
    a = jnp.where(key_padding_mask[:, None], -1.0e9, a)
    a = jax.nn.softmax(a, axis=-1)
    a = jnp.einsum('bhqk,bhkd->bhqd', a, v_)
    a = jnp.transpose(a, (0, 2, 1, 3)).reshape(B, S, D)
    a = a + queries
    mean = a.mean(-1, keepdims=True)
    var = ((a - mean) ** 2).mean(-1, keepdims=True)
    return (a - mean) / jnp.sqrt(var + 1e-5) * gamma + beta


if __name__ == "__main__":
    # Small, self-consistent shapes: num_units == d_model == 128 (lane-dense), heads = 4.
    B, S, D, H = 4, 8, 128, 4

    key = jax.random.PRNGKey(0)
    ks = jax.random.split(key, 9)
    # Deterministic parameter init (synthetic; not a checkpoint load).
    wq = 0.1 * jax.random.normal(ks[0], (D, D), jnp.float32)
    bq = 0.1 * jax.random.normal(ks[1], (1, D), jnp.float32)
    wk = 0.1 * jax.random.normal(ks[2], (D, D), jnp.float32)
    bk = 0.1 * jax.random.normal(ks[3], (1, D), jnp.float32)
    wv = 0.1 * jax.random.normal(ks[4], (D, D), jnp.float32)
    bv = 0.1 * jax.random.normal(ks[5], (1, D), jnp.float32)
    gamma = jnp.ones((1, D), jnp.float32)
    beta = jnp.zeros((1, D), jnp.float32)
    params = (wq, bq, wk, bk, wv, bv, gamma, beta)

    queries = jax.random.normal(ks[6], (B, S, D), jnp.float32)
    keys_in = jax.random.normal(ks[7], (B, S, D), jnp.float32)
    values = jax.random.normal(ks[8], (B, S, D), jnp.float32)

    # Per-batch valid key lengths (>= 1 so every softmax row has an unmasked key).
    lens = jnp.array([8, 6, 8, 3], dtype=jnp.int32)
    key_pad = jnp.arange(S)[None, :] >= lens[:, None]            # (B, S) bool
    pad_mask = jnp.broadcast_to(key_pad[:, None, :], (B, S, S))  # (B, S, S) bool

    # mask=False branch: enc-dec key padding only.
    out = multi_head_attention(queries, keys_in, values, lens, params,
                               num_heads=H, mask=False)
    out = jax.block_until_ready(out)
    ref = reference_mha(queries, keys_in, values, params, num_heads=H,
                        key_padding_mask=pad_mask, causal=False)
    np.testing.assert_allclose(np.asarray(out), np.asarray(ref), rtol=2e-2, atol=2e-2)

    # mask=True branch: causal bias + self padding.
    out_c = multi_head_attention(queries, keys_in, values, lens, params,
                                 num_heads=H, mask=True)
    out_c = jax.block_until_ready(out_c)
    ref_c = reference_mha(queries, keys_in, values, params, num_heads=H,
                          key_padding_mask=pad_mask, causal=True)
    np.testing.assert_allclose(np.asarray(out_c), np.asarray(ref_c), rtol=2e-2, atol=2e-2)

    print("KERNEL_OK")
</pallas_src>

<mosaic_0001>
module attributes {stable_mosaic.version = 11 : i64} {
  func.func @mha_kernel(%arg0: i32, %arg1: memref<4xi32, #tpu.memory_space<smem>>, %arg2: memref<1x8x128xf32, #tpu.memory_space<vmem>>, %arg3: memref<1x8x128xf32, #tpu.memory_space<vmem>>, %arg4: memref<1x8x128xf32, #tpu.memory_space<vmem>>, %arg5: memref<128x128xbf16, #tpu.memory_space<vmem>>, %arg6: memref<128x128xbf16, #tpu.memory_space<vmem>>, %arg7: memref<128x128xbf16, #tpu.memory_space<vmem>>, %arg8: memref<8x128xf32, #tpu.memory_space<vmem>>, %arg9: memref<1x8x128xf32, #tpu.memory_space<vmem>>) attributes {dimension_semantics = [#tpu.dimension_semantics<parallel>], iteration_bounds = array<i64: 4>, scalar_prefetch = 1 : i64, scratch_operands = 0 : i64, tpu.core_type = #tpu.core_type<tc>, window_params = [{transform_indices = @transform_0, window_bounds = array<i64: 1, 8, 128>}, {transform_indices = @transform_1, window_bounds = array<i64: 1, 8, 128>}, {transform_indices = @transform_2, window_bounds = array<i64: 1, 8, 128>}, {pipeline_mode = #tpu.pipeline_mode<synchronous>, transform_indices = @transform_3, window_bounds = array<i64: 128, 128>}, {pipeline_mode = #tpu.pipeline_mode<synchronous>, transform_indices = @transform_4, window_bounds = array<i64: 128, 128>}, {pipeline_mode = #tpu.pipeline_mode<synchronous>, transform_indices = @transform_5, window_bounds = array<i64: 128, 128>}, {pipeline_mode = #tpu.pipeline_mode<synchronous>, transform_indices = @transform_6, window_bounds = array<i64: 8, 128>}, {transform_indices = @transform_7, window_bounds = array<i64: 1, 8, 128>}]} {
    %c0 = arith.constant 0 : index
    %c0_0 = arith.constant 0 : index
    %0 = vector.load %arg8[%c0, %c0_0] : memref<8x128xf32, #tpu.memory_space<vmem>>, vector<1x128xf32>
    %c1 = arith.constant 1 : index
    %c0_1 = arith.constant 0 : index
    %1 = vector.load %arg8[%c1, %c0_1] : memref<8x128xf32, #tpu.memory_space<vmem>>, vector<1x128xf32>
    %c2 = arith.constant 2 : index
    %c0_2 = arith.constant 0 : index
    %2 = vector.load %arg8[%c2, %c0_2] : memref<8x128xf32, #tpu.memory_space<vmem>>, vector<1x128xf32>
    %c3 = arith.constant 3 : index
    %c0_3 = arith.constant 0 : index
    %3 = vector.load %arg8[%c3, %c0_3] : memref<8x128xf32, #tpu.memory_space<vmem>>, vector<1x128xf32>
    %c4 = arith.constant 4 : index
    %c0_4 = arith.constant 0 : index
    %4 = vector.load %arg8[%c4, %c0_4] : memref<8x128xf32, #tpu.memory_space<vmem>>, vector<1x128xf32>
    %c0_5 = arith.constant 0 : index
    %c0_6 = arith.constant 0 : index
    %c0_7 = arith.constant 0 : index
    %5 = vector.load %arg2[%c0_5, %c0_6, %c0_7] : memref<1x8x128xf32, #tpu.memory_space<vmem>>, vector<1x8x128xf32>
    %6 = vector.shape_cast %5 : vector<1x8x128xf32> to vector<8x128xf32>
    %c0_8 = arith.constant 0 : index
    %c0_9 = arith.constant 0 : index
    %c0_10 = arith.constant 0 : index
    %7 = vector.load %arg3[%c0_8, %c0_9, %c0_10] : memref<1x8x128xf32, #tpu.memory_space<vmem>>, vector<1x8x128xf32>
    %8 = vector.shape_cast %7 : vector<1x8x128xf32> to vector<8x128xf32>
    %c0_11 = arith.constant 0 : index
    %c0_12 = arith.constant 0 : index
    %c0_13 = arith.constant 0 : index
    %9 = vector.load %arg4[%c0_11, %c0_12, %c0_13] : memref<1x8x128xf32, #tpu.memory_space<vmem>>, vector<1x8x128xf32>
    %10 = vector.shape_cast %9 : vector<1x8x128xf32> to vector<8x128xf32>
    %11 = arith.truncf %6 : vector<8x128xf32> to vector<8x128xbf16>
    %c0_14 = arith.constant 0 : index
    %c0_15 = arith.constant 0 : index
    %12 = vector.load %arg5[%c0_14, %c0_15] : memref<128x128xbf16, #tpu.memory_space<vmem>>, vector<128x128xbf16>
    %cst = arith.constant dense<0.000000e+00> : vector<8x128xf32>
    %13 = tpu.matmul %11, %12, %cst {dimension_numbers = #tpu.dot_dimension_numbers<[1], [0], [0], [1], [0, 0, 1, 1], [], []>} : vector<8x128xbf16>, vector<128x128xbf16>, vector<8x128xf32> -> vector<8x128xf32>
    %14 = vector.broadcast %0 : vector<1x128xf32> to vector<8x128xf32>
    %15 = arith.addf %13, %14 : vector<8x128xf32>
    %cst_16 = arith.constant 0.000000e+00 : f32
    %16 = vector.broadcast %cst_16 : f32 to vector<8x128xf32>
    %17 = arith.maximumf %15, %16 : vector<8x128xf32>
    %18 = arith.truncf %8 : vector<8x128xf32> to vector<8x128xbf16>
    %c0_17 = arith.constant 0 : index
    %c0_18 = arith.constant 0 : index
    %19 = vector.load %arg6[%c0_17, %c0_18] : memref<128x128xbf16, #tpu.memory_space<vmem>>, vector<128x128xbf16>
    %cst_19 = arith.constant dense<0.000000e+00> : vector<8x128xf32>
    %20 = tpu.matmul %18, %19, %cst_19 {dimension_numbers = #tpu.dot_dimension_numbers<[1], [0], [0], [1], [0, 0, 1, 1], [], []>} : vector<8x128xbf16>, vector<128x128xbf16>, vector<8x128xf32> -> vector<8x128xf32>
    %21 = vector.broadcast %1 : vector<1x128xf32> to vector<8x128xf32>
    %22 = arith.addf %20, %21 : vector<8x128xf32>
    %cst_20 = arith.constant 0.000000e+00 : f32
    %23 = vector.broadcast %cst_20 : f32 to vector<8x128xf32>
    %24 = arith.maximumf %22, %23 : vector<8x128xf32>
    %25 = arith.truncf %10 : vector<8x128xf32> to vector<8x128xbf16>
    %c0_21 = arith.constant 0 : index
    %c0_22 = arith.constant 0 : index
    %26 = vector.load %arg7[%c0_21, %c0_22] : memref<128x128xbf16, #tpu.memory_space<vmem>>, vector<128x128xbf16>
    %cst_23 = arith.constant dense<0.000000e+00> : vector<8x128xf32>
    %27 = tpu.matmul %25, %26, %cst_23 {dimension_numbers = #tpu.dot_dimension_numbers<[1], [0], [0], [1], [0, 0, 1, 1], [], []>} : vector<8x128xbf16>, vector<128x128xbf16>, vector<8x128xf32> -> vector<8x128xf32>
    %28 = vector.broadcast %2 : vector<1x128xf32> to vector<8x128xf32>
    %29 = arith.addf %27, %28 : vector<8x128xf32>
    %cst_24 = arith.constant 0.000000e+00 : f32
    %30 = vector.broadcast %cst_24 : f32 to vector<8x128xf32>
    %31 = arith.maximumf %29, %30 : vector<8x128xf32>
    %cst_25 = arith.constant 0.176776692 : f32
    %32 = vector.broadcast %cst_25 : f32 to vector<8x128xf32>
    %33 = arith.mulf %17, %32 : vector<8x128xf32>
    %34 = vector.shape_cast %33 : vector<8x128xf32> to vector<1x8x128xf32>
    %35 = vector.shape_cast %24 : vector<8x128xf32> to vector<1x8x128xf32>
    %36 = vector.shape_cast %31 : vector<8x128xf32> to vector<1x8x128xf32>
    %37 = arith.truncf %35 : vector<1x8x128xf32> to vector<1x8x128xbf16>
    %38 = tpu.iota {dimensions = array<i32: 2>} : vector<1x8x8xi32>
    %39 = tpu.iota {dimensions = array<i32: 0>} : vector<1x1x1xi32>
    %c0_i32 = arith.constant 0 : i32
    %40 = vector.broadcast %c0_i32 : i32 to vector<1x1x1xi32>
    %c0_i32_26 = arith.constant 0 : i32
    %41 = vector.broadcast %c0_i32_26 : i32 to vector<1x1x1xi32>
    %42 = arith.cmpi eq, %39, %41 : vector<1x1x1xi32>
    %c1_i32 = arith.constant 1 : i32
    %43 = arith.muli %arg0, %c1_i32 : i32
    %c0_i32_27 = arith.constant 0 : i32
    %44 = arith.addi %43, %c0_i32_27 : i32
    %45 = arith.index_cast %44 : i32 to index
    %46 = memref.load %arg1[%45] : memref<4xi32, #tpu.memory_space<smem>>
    %47 = vector.broadcast %46 : i32 to vector<1x1x1xi32>
    %48 = arith.select %42, %47, %40 : vector<1x1x1xi1>, vector<1x1x1xi32>
    %49 = vector.broadcast %48 : vector<1x1x1xi32> to vector<1x8x8xi32>
    %50 = arith.cmpi sge, %38, %49 : vector<1x8x8xi32>
    %cst_28 = arith.constant -1.000000e+09 : f32
    %cst_29 = arith.constant 0.000000e+00 : f32
    %51 = vector.broadcast %cst_28 : f32 to vector<1x8x8xf32>
    %52 = vector.broadcast %cst_29 : f32 to vector<1x8x8xf32>
    %53 = arith.select %50, %51, %52 : vector<1x8x8xi1>, vector<1x8x8xf32>
    %54 = tpu.iota {dimensions = array<i32: 2>} : vector<1x1x128xi32>
    %cst_30 = arith.constant 0.000000e+00 : f32
    %55 = vector.broadcast %cst_30 : f32 to vector<1x8x128xf32>
    %c0_i32_31 = arith.constant 0 : i32
    %56 = vector.broadcast %c0_i32_31 : i32 to vector<1x1x128xi32>
    %57 = arith.cmpi sge, %54, %56 : vector<1x1x128xi32>
    %c32_i32 = arith.constant 32 : i32
    %58 = vector.broadcast %c32_i32 : i32 to vector<1x1x128xi32>
    %59 = arith.cmpi slt, %54, %58 : vector<1x1x128xi32>
    %60 = arith.andi %57, %59 : vector<1x1x128xi1>
    %cst_32 = arith.constant 0.000000e+00 : f32
    %61 = vector.shape_cast %60 : vector<1x1x128xi1> to vector<1x1x128xi1>
    %62 = vector.broadcast %61 : vector<1x1x128xi1> to vector<1x8x128xi1>
    %63 = vector.broadcast %cst_32 : f32 to vector<1x8x128xf32>
    %64 = arith.select %62, %34, %63 : vector<1x8x128xi1>, vector<1x8x128xf32>
    %65 = arith.truncf %64 : vector<1x8x128xf32> to vector<1x8x128xbf16>
    %cst_33 = arith.constant 0.000000e+00 : f32
    %66 = vector.shape_cast %60 : vector<1x1x128xi1> to vector<1x1x128xi1>
    %67 = vector.broadcast %66 : vector<1x1x128xi1> to vector<1x8x128xi1>
    %68 = vector.broadcast %cst_33 : f32 to vector<1x8x128xf32>
    %69 = arith.select %67, %36, %68 : vector<1x8x128xi1>, vector<1x8x128xf32>
    %70 = arith.truncf %69 : vector<1x8x128xf32> to vector<1x8x128xbf16>
    "tpu.trace_start"() <{level = 10 : i32, message = "bqd,bkd->bqk"}> : () -> ()
    %cst_34 = arith.constant dense<0.000000e+00> : vector<1x8x8xf32>
    %71 = tpu.matmul %65, %37, %cst_34 {dimension_numbers = #tpu.dot_dimension_numbers<[2], [2], [1], [1], [0, 0, 0, 1, 1, 1], [0], [0]>} : vector<1x8x128xbf16>, vector<1x8x128xbf16>, vector<1x8x8xf32> -> vector<1x8x8xf32>
    "tpu.trace_stop"() : () -> ()
    %72 = arith.addf %71, %53 : vector<1x8x8xf32>
    %cst_35 = arith.constant dense<0xFF800000> : vector<1x8xf32>
    %73 = vector.multi_reduction <maximumf>, %72, %cst_35 [2] : vector<1x8x8xf32> to vector<1x8xf32>
    %74 = vector.shape_cast %73 : vector<1x8xf32> to vector<1x8x1xf32>
    %75 = vector.broadcast %74 : vector<1x8x1xf32> to vector<1x8x8xf32>
    %76 = arith.subf %72, %75 : vector<1x8x8xf32>
    %77 = math.exp %76 : vector<1x8x8xf32>
    %cst_36 = arith.constant dense<0.000000e+00> : vector<1x8xf32>
    %78 = vector.multi_reduction <add>, %77, %cst_36 [2] : vector<1x8x8xf32> to vector<1x8xf32>
    %79 = vector.shape_cast %78 : vector<1x8xf32> to vector<1x8x1xf32>
    %80 = tpu.reciprocal %79 {approx = true} : vector<1x8x1xf32> -> vector<1x8x1xf32>
    %81 = vector.broadcast %80 : vector<1x8x1xf32> to vector<1x8x8xf32>
    %82 = arith.mulf %77, %81 : vector<1x8x8xf32>
    %83 = arith.truncf %82 : vector<1x8x8xf32> to vector<1x8x8xbf16>
    "tpu.trace_start"() <{level = 10 : i32, message = "bqk,bkd->bqd"}> : () -> ()
    %cst_37 = arith.constant dense<0.000000e+00> : vector<1x8x128xf32>
    %84 = tpu.matmul %83, %70, %cst_37 {dimension_numbers = #tpu.dot_dimension_numbers<[2], [1], [1], [2], [0, 0, 0, 1, 1, 2], [0], [0]>} : vector<1x8x8xbf16>, vector<1x8x128xbf16>, vector<1x8x128xf32> -> vector<1x8x128xf32>
    "tpu.trace_stop"() : () -> ()
    %85 = arith.addf %55, %84 : vector<1x8x128xf32>
    %c32_i32_38 = arith.constant 32 : i32
    %86 = vector.broadcast %c32_i32_38 : i32 to vector<1x1x128xi32>
    %87 = arith.cmpi sge, %54, %86 : vector<1x1x128xi32>
    %c64_i32 = arith.constant 64 : i32
    %88 = vector.broadcast %c64_i32 : i32 to vector<1x1x128xi32>
    %89 = arith.cmpi slt, %54, %88 : vector<1x1x128xi32>
    %90 = arith.andi %87, %89 : vector<1x1x128xi1>
    %cst_39 = arith.constant 0.000000e+00 : f32
    %91 = vector.shape_cast %90 : vector<1x1x128xi1> to vector<1x1x128xi1>
    %92 = vector.broadcast %91 : vector<1x1x128xi1> to vector<1x8x128xi1>
    %93 = vector.broadcast %cst_39 : f32 to vector<1x8x128xf32>
    %94 = arith.select %92, %34, %93 : vector<1x8x128xi1>, vector<1x8x128xf32>
    %95 = arith.truncf %94 : vector<1x8x128xf32> to vector<1x8x128xbf16>
    %cst_40 = arith.constant 0.000000e+00 : f32
    %96 = vector.shape_cast %90 : vector<1x1x128xi1> to vector<1x1x128xi1>
    %97 = vector.broadcast %96 : vector<1x1x128xi1> to vector<1x8x128xi1>
    %98 = vector.broadcast %cst_40 : f32 to vector<1x8x128xf32>
    %99 = arith.select %97, %36, %98 : vector<1x8x128xi1>, vector<1x8x128xf32>
    %100 = arith.truncf %99 : vector<1x8x128xf32> to vector<1x8x128xbf16>
    "tpu.trace_start"() <{level = 10 : i32, message = "bqd,bkd->bqk"}> : () -> ()
    %cst_41 = arith.constant dense<0.000000e+00> : vector<1x8x8xf32>
    %101 = tpu.matmul %95, %37, %cst_41 {dimension_numbers = #tpu.dot_dimension_numbers<[2], [2], [1], [1], [0, 0, 0, 1, 1, 1], [0], [0]>} : vector<1x8x128xbf16>, vector<1x8x128xbf16>, vector<1x8x8xf32> -> vector<1x8x8xf32>
    "tpu.trace_stop"() : () -> ()
    %102 = arith.addf %101, %53 : vector<1x8x8xf32>
    %cst_42 = arith.constant dense<0xFF800000> : vector<1x8xf32>
    %103 = vector.multi_reduction <maximumf>, %102, %cst_42 [2] : vector<1x8x8xf32> to vector<1x8xf32>
    %104 = vector.shape_cast %103 : vector<1x8xf32> to vector<1x8x1xf32>
    %105 = vector.broadcast %104 : vector<1x8x1xf32> to vector<1x8x8xf32>
    %106 = arith.subf %102, %105 : vector<1x8x8xf32>
    %107 = math.exp %106 : vector<1x8x8xf32>
    %cst_43 = arith.constant dense<0.000000e+00> : vector<1x8xf32>
    %108 = vector.multi_reduction <add>, %107, %cst_43 [2] : vector<1x8x8xf32> to vector<1x8xf32>
    %109 = vector.shape_cast %108 : vector<1x8xf32> to vector<1x8x1xf32>
    %110 = tpu.reciprocal %109 {approx = true} : vector<1x8x1xf32> -> vector<1x8x1xf32>
    %111 = vector.broadcast %110 : vector<1x8x1xf32> to vector<1x8x8xf32>
    %112 = arith.mulf %107, %111 : vector<1x8x8xf32>
    %113 = arith.truncf %112 : vector<1x8x8xf32> to vector<1x8x8xbf16>
    "tpu.trace_start"() <{level = 10 : i32, message = "bqk,bkd->bqd"}> : () -> ()
    %cst_44 = arith.constant dense<0.000000e+00> : vector<1x8x128xf32>
    %114 = tpu.matmul %113, %100, %cst_44 {dimension_numbers = #tpu.dot_dimension_numbers<[2], [1], [1], [2], [0, 0, 0, 1, 1, 2], [0], [0]>} : vector<1x8x8xbf16>, vector<1x8x128xbf16>, vector<1x8x128xf32> -> vector<1x8x128xf32>
    "tpu.trace_stop"() : () -> ()
    %115 = arith.addf %85, %114 : vector<1x8x128xf32>
    %c64_i32_45 = arith.constant 64 : i32
    %116 = vector.broadcast %c64_i32_45 : i32 to vector<1x1x128xi32>
    %117 = arith.cmpi sge, %54, %116 : vector<1x1x128xi32>
    %c96_i32 = arith.constant 96 : i32
    %118 = vector.broadcast %c96_i32 : i32 to vector<1x1x128xi32>
    %119 = arith.cmpi slt, %54, %118 : vector<1x1x128xi32>
    %120 = arith.andi %117, %119 : vector<1x1x128xi1>
    %cst_46 = arith.constant 0.000000e+00 : f32
    %121 = vector.shape_cast %120 : vector<1x1x128xi1> to vector<1x1x128xi1>
    %122 = vector.broadcast %121 : vector<1x1x128xi1> to vector<1x8x128xi1>
    %123 = vector.broadcast %cst_46 : f32 to vector<1x8x128xf32>
    %124 = arith.select %122, %34, %123 : vector<1x8x128xi1>, vector<1x8x128xf32>
    %125 = arith.truncf %124 : vector<1x8x128xf32> to vector<1x8x128xbf16>
    %cst_47 = arith.constant 0.000000e+00 : f32
    %126 = vector.shape_cast %120 : vector<1x1x128xi1> to vector<1x1x128xi1>
    %127 = vector.broadcast %126 : vector<1x1x128xi1> to vector<1x8x128xi1>
    %128 = vector.broadcast %cst_47 : f32 to vector<1x8x128xf32>
    %129 = arith.select %127, %36, %128 : vector<1x8x128xi1>, vector<1x8x128xf32>
    %130 = arith.truncf %129 : vector<1x8x128xf32> to vector<1x8x128xbf16>
    "tpu.trace_start"() <{level = 10 : i32, message = "bqd,bkd->bqk"}> : () -> ()
    %cst_48 = arith.constant dense<0.000000e+00> : vector<1x8x8xf32>
    %131 = tpu.matmul %125, %37, %cst_48 {dimension_numbers = #tpu.dot_dimension_numbers<[2], [2], [1], [1], [0, 0, 0, 1, 1, 1], [0], [0]>} : vector<1x8x128xbf16>, vector<1x8x128xbf16>, vector<1x8x8xf32> -> vector<1x8x8xf32>
    "tpu.trace_stop"() : () -> ()
    %132 = arith.addf %131, %53 : vector<1x8x8xf32>
    %cst_49 = arith.constant dense<0xFF800000> : vector<1x8xf32>
    %133 = vector.multi_reduction <maximumf>, %132, %cst_49 [2] : vector<1x8x8xf32> to vector<1x8xf32>
    %134 = vector.shape_cast %133 : vector<1x8xf32> to vector<1x8x1xf32>
    %135 = vector.broadcast %134 : vector<1x8x1xf32> to vector<1x8x8xf32>
    %136 = arith.subf %132, %135 : vector<1x8x8xf32>
    %137 = math.exp %136 : vector<1x8x8xf32>
    %cst_50 = arith.constant dense<0.000000e+00> : vector<1x8xf32>
    %138 = vector.multi_reduction <add>, %137, %cst_50 [2] : vector<1x8x8xf32> to vector<1x8xf32>
    %139 = vector.shape_cast %138 : vector<1x8xf32> to vector<1x8x1xf32>
    %140 = tpu.reciprocal %139 {approx = true} : vector<1x8x1xf32> -> vector<1x8x1xf32>
    %141 = vector.broadcast %140 : vector<1x8x1xf32> to vector<1x8x8xf32>
    %142 = arith.mulf %137, %141 : vector<1x8x8xf32>
    %143 = arith.truncf %142 : vector<1x8x8xf32> to vector<1x8x8xbf16>
    "tpu.trace_start"() <{level = 10 : i32, message = "bqk,bkd->bqd"}> : () -> ()
    %cst_51 = arith.constant dense<0.000000e+00> : vector<1x8x128xf32>
    %144 = tpu.matmul %143, %130, %cst_51 {dimension_numbers = #tpu.dot_dimension_numbers<[2], [1], [1], [2], [0, 0, 0, 1, 1, 2], [0], [0]>} : vector<1x8x8xbf16>, vector<1x8x128xbf16>, vector<1x8x128xf32> -> vector<1x8x128xf32>
    "tpu.trace_stop"() : () -> ()
    %145 = arith.addf %115, %144 : vector<1x8x128xf32>
    %c96_i32_52 = arith.constant 96 : i32
    %146 = vector.broadcast %c96_i32_52 : i32 to vector<1x1x128xi32>
    %147 = arith.cmpi sge, %54, %146 : vector<1x1x128xi32>
    %c128_i32 = arith.constant 128 : i32
    %148 = vector.broadcast %c128_i32 : i32 to vector<1x1x128xi32>
    %149 = arith.cmpi slt, %54, %148 : vector<1x1x128xi32>
    %150 = arith.andi %147, %149 : vector<1x1x128xi1>
    %cst_53 = arith.constant 0.000000e+00 : f32
    %151 = vector.shape_cast %150 : vector<1x1x128xi1> to vector<1x1x128xi1>
    %152 = vector.broadcast %151 : vector<1x1x128xi1> to vector<1x8x128xi1>
    %153 = vector.broadcast %cst_53 : f32 to vector<1x8x128xf32>
    %154 = arith.select %152, %34, %153 : vector<1x8x128xi1>, vector<1x8x128xf32>
    %155 = arith.truncf %154 : vector<1x8x128xf32> to vector<1x8x128xbf16>
    %cst_54 = arith.constant 0.000000e+00 : f32
    %156 = vector.shape_cast %150 : vector<1x1x128xi1> to vector<1x1x128xi1>
    %157 = vector.broadcast %156 : vector<1x1x128xi1> to vector<1x8x128xi1>
    %158 = vector.broadcast %cst_54 : f32 to vector<1x8x128xf32>
    %159 = arith.select %157, %36, %158 : vector<1x8x128xi1>, vector<1x8x128xf32>
    %160 = arith.truncf %159 : vector<1x8x128xf32> to vector<1x8x128xbf16>
    "tpu.trace_start"() <{level = 10 : i32, message = "bqd,bkd->bqk"}> : () -> ()
    %cst_55 = arith.constant dense<0.000000e+00> : vector<1x8x8xf32>
    %161 = tpu.matmul %155, %37, %cst_55 {dimension_numbers = #tpu.dot_dimension_numbers<[2], [2], [1], [1], [0, 0, 0, 1, 1, 1], [0], [0]>} : vector<1x8x128xbf16>, vector<1x8x128xbf16>, vector<1x8x8xf32> -> vector<1x8x8xf32>
    "tpu.trace_stop"() : () -> ()
    %162 = arith.addf %161, %53 : vector<1x8x8xf32>
    %cst_56 = arith.constant dense<0xFF800000> : vector<1x8xf32>
    %163 = vector.multi_reduction <maximumf>, %162, %cst_56 [2] : vector<1x8x8xf32> to vector<1x8xf32>
    %164 = vector.shape_cast %163 : vector<1x8xf32> to vector<1x8x1xf32>
    %165 = vector.broadcast %164 : vector<1x8x1xf32> to vector<1x8x8xf32>
    %166 = arith.subf %162, %165 : vector<1x8x8xf32>
    %167 = math.exp %166 : vector<1x8x8xf32>
    %cst_57 = arith.constant dense<0.000000e+00> : vector<1x8xf32>
    %168 = vector.multi_reduction <add>, %167, %cst_57 [2] : vector<1x8x8xf32> to vector<1x8xf32>
    %169 = vector.shape_cast %168 : vector<1x8xf32> to vector<1x8x1xf32>
    %170 = tpu.reciprocal %169 {approx = true} : vector<1x8x1xf32> -> vector<1x8x1xf32>
    %171 = vector.broadcast %170 : vector<1x8x1xf32> to vector<1x8x8xf32>
    %172 = arith.mulf %167, %171 : vector<1x8x8xf32>
    %173 = arith.truncf %172 : vector<1x8x8xf32> to vector<1x8x8xbf16>
    "tpu.trace_start"() <{level = 10 : i32, message = "bqk,bkd->bqd"}> : () -> ()
    %cst_58 = arith.constant dense<0.000000e+00> : vector<1x8x128xf32>
    %174 = tpu.matmul %173, %160, %cst_58 {dimension_numbers = #tpu.dot_dimension_numbers<[2], [1], [1], [2], [0, 0, 0, 1, 1, 2], [0], [0]>} : vector<1x8x8xbf16>, vector<1x8x128xbf16>, vector<1x8x128xf32> -> vector<1x8x128xf32>
    "tpu.trace_stop"() : () -> ()
    %175 = arith.addf %145, %174 : vector<1x8x128xf32>
    %176 = arith.addf %175, %5 : vector<1x8x128xf32>
    %cst_59 = arith.constant dense<0.000000e+00> : vector<1x8xf32>
    %177 = vector.multi_reduction <add>, %176, %cst_59 [2] : vector<1x8x128xf32> to vector<1x8xf32>
    %178 = vector.shape_cast %177 : vector<1x8xf32> to vector<1x8x1xf32>
    %cst_60 = arith.constant 1.280000e+02 : f32
    %179 = vector.broadcast %cst_60 : f32 to vector<1x8x1xf32>
    %180 = arith.divf %178, %179 : vector<1x8x1xf32>
    %181 = vector.broadcast %180 : vector<1x8x1xf32> to vector<1x8x128xf32>
    %182 = arith.subf %176, %181 : vector<1x8x128xf32>
    %183 = arith.mulf %182, %182 : vector<1x8x128xf32>
    %cst_61 = arith.constant dense<0.000000e+00> : vector<1x8xf32>
    %184 = vector.multi_reduction <add>, %183, %cst_61 [2] : vector<1x8x128xf32> to vector<1x8xf32>
    %185 = vector.shape_cast %184 : vector<1x8xf32> to vector<1x8x1xf32>
    %cst_62 = arith.constant 1.280000e+02 : f32
    %186 = vector.broadcast %cst_62 : f32 to vector<1x8x1xf32>
    %187 = arith.divf %185, %186 : vector<1x8x1xf32>
    %188 = vector.broadcast %180 : vector<1x8x1xf32> to vector<1x8x128xf32>
    %189 = arith.subf %176, %188 : vector<1x8x128xf32>
    %cst_63 = arith.constant 9.99999974E-6 : f32
    %190 = vector.broadcast %cst_63 : f32 to vector<1x8x1xf32>
    %191 = arith.addf %187, %190 : vector<1x8x1xf32>
    %192 = math.rsqrt %191 : vector<1x8x1xf32>
    %193 = vector.broadcast %192 : vector<1x8x1xf32> to vector<1x8x128xf32>
    %194 = arith.mulf %189, %193 : vector<1x8x128xf32>
    %195 = vector.shape_cast %3 : vector<1x128xf32> to vector<1x1x128xf32>
    %196 = vector.broadcast %195 : vector<1x1x128xf32> to vector<1x8x128xf32>
    %197 = arith.mulf %194, %196 : vector<1x8x128xf32>
    %198 = vector.shape_cast %4 : vector<1x128xf32> to vector<1x1x128xf32>
    %199 = vector.broadcast %198 : vector<1x1x128xf32> to vector<1x8x128xf32>
    %200 = arith.addf %197, %199 : vector<1x8x128xf32>
    %c0_64 = arith.constant 0 : index
    %c0_65 = arith.constant 0 : index
    %c0_66 = arith.constant 0 : index
    %201 = vector.load %arg9[%c0_64, %c0_65, %c0_66] : memref<1x8x128xf32, #tpu.memory_space<vmem>>, vector<1x8x128xf32>
    tpu.vector_store %arg9[%c0_64, %c0_65, %c0_66], %200 {strides = array<i32>} : memref<1x8x128xf32, #tpu.memory_space<vmem>>, vector<1x8x128xf32>,
    return
  }
  func.func @transform_0(%arg0: i32, %arg1: memref<4xi32, #tpu.memory_space<smem>>) -> (i32, i32, i32) {
    %c0_i32 = arith.constant 0 : i32
    %c0_i32_0 = arith.constant 0 : i32
    %c0_i32_1 = arith.constant 0 : i32
    return %arg0, %c0_i32, %c0_i32_0 : i32, i32, i32
  }
  func.func @transform_1(%arg0: i32, %arg1: memref<4xi32, #tpu.memory_space<smem>>) -> (i32, i32, i32) {
    %c0_i32 = arith.constant 0 : i32
    %c0_i32_0 = arith.constant 0 : i32
    %c0_i32_1 = arith.constant 0 : i32
    return %arg0, %c0_i32, %c0_i32_0 : i32, i32, i32
  }
  func.func @transform_2(%arg0: i32, %arg1: memref<4xi32, #tpu.memory_space<smem>>) -> (i32, i32, i32) {
    %c0_i32 = arith.constant 0 : i32
    %c0_i32_0 = arith.constant 0 : i32
    %c0_i32_1 = arith.constant 0 : i32
    return %arg0, %c0_i32, %c0_i32_0 : i32, i32, i32
  }
  func.func @transform_3(%arg0: i32, %arg1: memref<4xi32, #tpu.memory_space<smem>>) -> (i32, i32) {
    %c0_i32 = arith.constant 0 : i32
    %c0_i32_0 = arith.constant 0 : i32
    %c0_i32_1 = arith.constant 0 : i32
    return %c0_i32, %c0_i32_0 : i32, i32
  }
  func.func @transform_4(%arg0: i32, %arg1: memref<4xi32, #tpu.memory_space<smem>>) -> (i32, i32) {
    %c0_i32 = arith.constant 0 : i32
    %c0_i32_0 = arith.constant 0 : i32
    %c0_i32_1 = arith.constant 0 : i32
    return %c0_i32, %c0_i32_0 : i32, i32
  }
  func.func @transform_5(%arg0: i32, %arg1: memref<4xi32, #tpu.memory_space<smem>>) -> (i32, i32) {
    %c0_i32 = arith.constant 0 : i32
    %c0_i32_0 = arith.constant 0 : i32
    %c0_i32_1 = arith.constant 0 : i32
    return %c0_i32, %c0_i32_0 : i32, i32
  }
  func.func @transform_6(%arg0: i32, %arg1: memref<4xi32, #tpu.memory_space<smem>>) -> (i32, i32) {
    %c0_i32 = arith.constant 0 : i32
    %c0_i32_0 = arith.constant 0 : i32
    %c0_i32_1 = arith.constant 0 : i32
    return %c0_i32, %c0_i32_0 : i32, i32
  }
  func.func @transform_7(%arg0: i32, %arg1: memref<4xi32, #tpu.memory_space<smem>>) -> (i32, i32, i32) {
    %c0_i32 = arith.constant 0 : i32
    %c0_i32_0 = arith.constant 0 : i32
    %c0_i32_1 = arith.constant 0 : i32
    return %arg0, %c0_i32, %c0_i32_0 : i32, i32, i32
  }
}

</mosaic_0001>

<llo_original>
// kernel: tpu_custom_call.1
$region0: #{tpu_custom_call.1}
  #allocation0 [shape = 'u32[]', space=smem, size = 0x4, offset = 0x4, fixed_abs, tag = 'smem constant byte address 0x4 - core index']
  #allocation1 [shape = 'u32[144,128]{1,0:T(1,128)}', space=vmem, size = 0x12000, scoped, tag = 'internal scratch']
  #allocation2 [shape = 's32[1]{0}', space=sflag, size = 0x4, scoped, tag = 'scoped memory for tpu_custom_call.1']
  #allocation3 [shape = 'u8[512]{0}', space=smem, size = 0x200, scoped, tag = 'prefetched SMEM operand 0']
  %s0 = inlined_call_operand.hbm [shape: s32[4], index: 0, kind: input, shape index: {}]
  %s1 = inlined_call_operand.hbm [shape: f32[4,8,128], index: 1, kind: input, shape index: {}]
  %s2 = inlined_call_operand.hbm [shape: f32[4,8,128], index: 2, kind: input, shape index: {}]
  %s3 = inlined_call_operand.hbm [shape: f32[4,8,128], index: 3, kind: input, shape index: {}]
  %s4 = inlined_call_operand.hbm [shape: bf16[128,128], index: 4, kind: input, shape index: {}]
  %s5 = inlined_call_operand.hbm [shape: bf16[128,128], index: 5, kind: input, shape index: {}]
  %s6 = inlined_call_operand.hbm [shape: bf16[128,128], index: 6, kind: input, shape index: {}]
  %s7 = inlined_call_operand.vmem [shape: f32[8,128], index: 7, kind: input, shape index: {}]
  %s8 = inlined_call_operand.hbm [shape: f32[4,8,128], index: 8, kind: output, shape index: {}]
  %s9 = sld [smem:[#allocation0]]
  $region85: #{tpu_custom_call.1} parent=0
    _
  %s11 = ssub.s32 1, %s9
  %s12 = scalar_select 0, %s11, %s9
  %14 = dma.hbm_to_smem %s0, 16, [#allocation3], [#allocation2]
  %15 = dma.done [#allocation2], 16
  %16 = sfence
  $region1: #{tpu_custom_call.1} parent=0
    #allocation4 [shape = 'u8[8192]{0}', space=vmem, size = 0x2000, scoped, tag = 'input window, operand 1']
    #allocation5 [shape = 's32[2]{0}', space=sflag, size = 0x8, scoped, tag = 'scoped memory for tpu_custom_call.1']
    #allocation6 [shape = 's32[2]{0}', space=sflag, size = 0x8, scoped, tag = 'scoped memory for tpu_custom_call.1']
    #allocation7 [shape = 'u8[8192]{0}', space=vmem, size = 0x2000, scoped, tag = 'input window, operand 2']
    #allocation8 [shape = 's32[2]{0}', space=sflag, size = 0x8, scoped, tag = 'scoped memory for tpu_custom_call.1']
    #allocation9 [shape = 'u8[8192]{0}', space=vmem, size = 0x2000, scoped, tag = 'input window, operand 3']
    #allocation10 [shape = 'u8[32768]{0}', space=vmem, size = 0x8000, scoped, tag = 'input window, operand 4, single buffered']
    #allocation11 [shape = 's32[1]{0}', space=sflag, size = 0x4, scoped, tag = 'scoped memory for tpu_custom_call.1']
    #allocation12 [shape = 'u8[32768]{0}', space=vmem, size = 0x8000, scoped, tag = 'input window, operand 5, single buffered']
    #allocation13 [shape = 'u8[32768]{0}', space=vmem, size = 0x8000, scoped, tag = 'input window, operand 6, single buffered']
    #allocation14 [shape = 's32[1]{0}', space=sflag, size = 0x4, scoped, tag = 'scoped memory for tpu_custom_call.1']
    #allocation15 [shape = 'u8[8192]{0}', space=vmem, size = 0x2000, scoped, tag = 'output window, operand 0']
    %17 = vsyncpa [#allocation5], 0
    %s18 = scalar_lea.sflag [#allocation5], 1
    %19 = vsyncpa %s18, 0
    %20 = vsyncpa [#allocation8], 0
    %s21 = scalar_lea.sflag [#allocation8], 1
    %22 = vsyncpa %s21, 0
    %23 = vsyncpa [#allocation11], 0
    %24 = vsyncpa [#allocation14], 0
    %25 = vsyncpa [#allocation6], 0
    %s26 = scalar_lea.sflag [#allocation6], 1
    %27 = vsyncpa %s26, 0
    loop: start=0, step=1, limit=6
    $region2: #{tpu_custom_call.1} parent=1 // loop_pre_header
      _
    $region3: #{tpu_custom_call.1} parent=1 // loop_header
      %s29 = sphi 0, %s33
      %p30 = scmp.ge.s32.totalorder %s29, 6
      %s39 = sphi 0, %s41
      %s42 = sphi 0, %s39
      %s43 = sphi 0, %s42
      %s59 = sphi 0, %s43
      %s65 = sphi 0, %s67
      %s68 = sphi 0, %s65
      %s69 = sphi 0, %s68
      %s85 = sphi 0, %s69
      %s91 = sphi 0, %s93
      %s94 = sphi 0, %s91
      %s95 = sphi 0, %s94
      %s111 = sphi 0, %s95
      %s115 = sphi 0, %s115
      %s117 = sphi 0, %s115
      %s118 = sphi 0, %s117
      %s132 = sphi 0, %s118
      %s136 = sphi 0, %s136
      %s138 = sphi 0, %s136
      %s139 = sphi 0, %s138
      %s153 = sphi 0, %s139
      %s157 = sphi 0, %s157
      %s159 = sphi 0, %s157
      %s160 = sphi 0, %s159
      %s174 = sphi 0, %s160
      %s178 = sphi 0, %s178
      %s180 = sphi 0, %s178
      %s181 = sphi 0, %s180
      %s195 = sphi 0, %s181
      %s201 = sphi 0, %s203
      %s204 = sphi 0, %s201
      %s205 = sphi 0, %s204
      %s221 = sphi 0, %s205
    $region4: #{tpu_custom_call.1} parent=1 // loop_header_branch
      %32 = sbr.rel (%p30) target = $region8
    $region5: #{tpu_custom_call.1} parent=1 // loop_body
      %s34 = ssub.s32 %s29, 1
      %s35 = ssub.s32 %s29, 2
      %s36 = sadd.s32 %s29, 1
      %s37 = ssub.s32 %s29, %s36
      %p38 = scmp.eq.s32.totalorder %s37, 0
      %s40 = sadd.s32 %s39, 1
      %s41 = scalar_select %p38, %s39, %s40
      %p44 = pneg %p38
      %p45 = scmp.eq.s32.totalorder %s29, 3
      %p46 = por %p44, %p45
      %p47 = scmp.ne.s32.totalorder %s39, %s42
      %p48 = scmp.eq.s32.totalorder %s29, 0
      %p49 = por %p47, %p48
      %p50 = scmp.ne.s32.totalorder %s39, %s42
      %p51 = scmp.eq.s32.totalorder %s34, 3
      %p52 = por %p50, %p51
      %p53 = scmp.ne.s32.totalorder %s42, %s43
      %p54 = scmp.eq.s32.totalorder %s34, 0
      %p55 = por %p53, %p54
      %p56 = scmp.ne.s32.totalorder %s42, %s43
      %p57 = scmp.eq.s32.totalorder %s35, 3
      %p58 = por %p56, %p57
      %p60 = scmp.ne.s32.totalorder %s43, %s59
      %p61 = scmp.eq.s32.totalorder %s35, 0
      %p62 = por %p60, %p61
      %s63 = ssub.s32 %s29, %s36
      %p64 = scmp.eq.s32.totalorder %s63, 0
      %s66 = sadd.s32 %s65, 1
      %s67 = scalar_select %p64, %s65, %s66
      %p70 = pneg %p64
      %p71 = scmp.eq.s32.totalorder %s29, 3
      %p72 = por %p70, %p71
      %p73 = scmp.ne.s32.totalorder %s65, %s68
      %p74 = scmp.eq.s32.totalorder %s29, 0
      %p75 = por %p73, %p74
      %p76 = scmp.ne.s32.totalorder %s65, %s68
      %p77 = scmp.eq.s32.totalorder %s34, 3
      %p78 = por %p76, %p77
      %p79 = scmp.ne.s32.totalorder %s68, %s69
      %p80 = scmp.eq.s32.totalorder %s34, 0
      %p81 = por %p79, %p80
      %p82 = scmp.ne.s32.totalorder %s68, %s69
      %p83 = scmp.eq.s32.totalorder %s35, 3
      %p84 = por %p82, %p83
      %p86 = scmp.ne.s32.totalorder %s69, %s85
      %p87 = scmp.eq.s32.totalorder %s35, 0
      %p88 = por %p86, %p87
      %s89 = ssub.s32 %s29, %s36
      %p90 = scmp.eq.s32.totalorder %s89, 0
      %s92 = sadd.s32 %s91, 1
      %s93 = scalar_select %p90, %s91, %s92
      %p96 = pneg %p90
      %p97 = scmp.eq.s32.totalorder %s29, 3
      %p98 = por %p96, %p97
      %p99 = scmp.ne.s32.totalorder %s91, %s94
      %p100 = scmp.eq.s32.totalorder %s29, 0
      %p101 = por %p99, %p100
      %p102 = scmp.ne.s32.totalorder %s91, %s94
      %p103 = scmp.eq.s32.totalorder %s34, 3
      %p104 = por %p102, %p103
      %p105 = scmp.ne.s32.totalorder %s94, %s95
      %p106 = scmp.eq.s32.totalorder %s34, 0
      %p107 = por %p105, %p106
      %p108 = scmp.ne.s32.totalorder %s94, %s95
      %p109 = scmp.eq.s32.totalorder %s35, 3
      %p110 = por %p108, %p109
      %p112 = scmp.ne.s32.totalorder %s95, %s111
      %p113 = scmp.eq.s32.totalorder %s35, 0
      %p114 = por %p112, %p113
      %s116 = sadd.s32 %s115, 1
      %p119 = scmp.eq.s32.totalorder %s29, 3
      %p120 = scmp.ne.s32.totalorder %s115, %s117
      %p121 = scmp.eq.s32.totalorder %s29, 0
      %p122 = por %p120, %p121
      %p123 = scmp.ne.s32.totalorder %s115, %s117
      %p124 = scmp.eq.s32.totalorder %s34, 3
      %p125 = por %p123, %p124
      %p126 = scmp.ne.s32.totalorder %s117, %s118
      %p127 = scmp.eq.s32.totalorder %s34, 0
      %p128 = por %p126, %p127
      %p129 = scmp.ne.s32.totalorder %s117, %s118
      %p130 = scmp.eq.s32.totalorder %s35, 3
      %p131 = por %p129, %p130
      %p133 = scmp.ne.s32.totalorder %s118, %s132
      %p134 = scmp.eq.s32.totalorder %s35, 0
      %p135 = por %p133, %p134
      %s137 = sadd.s32 %s136, 1
      %p140 = scmp.eq.s32.totalorder %s29, 3
      %p141 = scmp.ne.s32.totalorder %s136, %s138
      %p142 = scmp.eq.s32.totalorder %s29, 0
      %p143 = por %p141, %p142
      %p144 = scmp.ne.s32.totalorder %s136, %s138
      %p145 = scmp.eq.s32.totalorder %s34, 3
      %p146 = por %p144, %p145
      %p147 = scmp.ne.s32.totalorder %s138, %s139
      %p148 = scmp.eq.s32.totalorder %s34, 0
      %p149 = por %p147, %p148
      %p150 = scmp.ne.s32.totalorder %s138, %s139
      %p151 = scmp.eq.s32.totalorder %s35, 3
      %p152 = por %p150, %p151
      %p154 = scmp.ne.s32.totalorder %s139, %s153
      %p155 = scmp.eq.s32.totalorder %s35, 0
      %p156 = por %p154, %p155
      %s158 = sadd.s32 %s157, 1
      %p161 = scmp.eq.s32.totalorder %s29, 3
      %p162 = scmp.ne.s32.totalorder %s157, %s159
      %p163 = scmp.eq.s32.totalorder %s29, 0
      %p164 = por %p162, %p163
      %p165 = scmp.ne.s32.totalorder %s157, %s159
      %p166 = scmp.eq.s32.totalorder %s34, 3
      %p167 = por %p165, %p166
      %p168 = scmp.ne.s32.totalorder %s159, %s160
      %p169 = scmp.eq.s32.totalorder %s34, 0
      %p170 = por %p168, %p169
      %p171 = scmp.ne.s32.totalorder %s159, %s160
      %p172 = scmp.eq.s32.totalorder %s35, 3
      %p173 = por %p171, %p172
      %p175 = scmp.ne.s32.totalorder %s160, %s174
      %p176 = scmp.eq.s32.totalorder %s35, 0
      %p177 = por %p175, %p176
      %s179 = sadd.s32 %s178, 1
      %p182 = scmp.eq.s32.totalorder %s29, 3
      %p183 = scmp.ne.s32.totalorder %s178, %s180
      %p184 = scmp.eq.s32.totalorder %s29, 0
      %p185 = por %p183, %p184
      %p186 = scmp.ne.s32.totalorder %s178, %s180
      %p187 = scmp.eq.s32.totalorder %s34, 3
      %p188 = por %p186, %p187
      %p189 = scmp.ne.s32.totalorder %s180, %s181
      %p190 = scmp.eq.s32.totalorder %s34, 0
      %p191 = por %p189, %p190
      %p192 = scmp.ne.s32.totalorder %s180, %s181
      %p193 = scmp.eq.s32.totalorder %s35, 3
      %p194 = por %p192, %p193
      %p196 = scmp.ne.s32.totalorder %s181, %s195
      %p197 = scmp.eq.s32.totalorder %s35, 0
      %p198 = por %p196, %p197
      %s199 = ssub.s32 %s29, %s36
      %p200 = scmp.eq.s32.totalorder %s199, 0
      %s202 = sadd.s32 %s201, 1
      %s203 = scalar_select %p200, %s201, %s202
      %p206 = pneg %p200
      %p207 = scmp.eq.s32.totalorder %s29, 3
      %p208 = por %p206, %p207
      %p209 = scmp.ne.s32.totalorder %s201, %s204
      %p210 = scmp.eq.s32.totalorder %s29, 0
      %p211 = por %p209, %p210
      %p212 = scmp.ne.s32.totalorder %s201, %s204
      %p213 = scmp.eq.s32.totalorder %s34, 3
      %p214 = por %p212, %p213
      %p215 = scmp.ne.s32.totalorder %s204, %s205
      %p216 = scmp.eq.s32.totalorder %s34, 0
      %p217 = por %p215, %p216
      %p218 = scmp.ne.s32.totalorder %s204, %s205
      %p219 = scmp.eq.s32.totalorder %s35, 3
      %p220 = por %p218, %p219
      %p222 = scmp.ne.s32.totalorder %s205, %s221
      %p223 = scmp.eq.s32.totalorder %s35, 0
      %p224 = por %p222, %p223
      %p225 = scmp.le.s32.totalorder 1, %s29
      %p226 = scmp.lt.s32.totalorder %s29, 5
      %p227 = pnand %p225, %p226
      %p228 = pneg %p227
      // Predicated region
      $region9: #{tpu_custom_call.1} parent=5 // pred_check
        _
      $region10: #{tpu_custom_call.1} parent=5 // pred_check_branch
        %230 = sbr.rel (%p227) target = $region12
      $region11: #{tpu_custom_call.1} parent=5 // pred_region
        %s231 = ssub.s32 %s29, 1
        // Predicated region
        $region13: #{tpu_custom_call.1} parent=11 // pred_check
          %p232 = pneg %p128
        $region14: #{tpu_custom_call.1} parent=11 // pred_check_branch
          %234 = sbr.rel (%p232) target = $region16
        $region15: #{tpu_custom_call.1} parent=11 // pred_region
          %s236 = ssub.s32 1024, 1024
          %237 = vsyncadd [#allocation11], %s236
          %s238 = sshll.u32 [#allocation10], 4
          %s239 = int_to_ptr.vmem [resolvable:$true] %s238
          %244 = dma.hbm_to_vmem [thread:$0]  %s4, 1024, %s239, [#allocation11], 64, 64, 4
        $region16: #{tpu_custom_call.1} parent=11 // pred_fallthru
          _
        // Predicated region
        $region17: #{tpu_custom_call.1} parent=11 // pred_check
          %p245 = pneg %p149
        $region18: #{tpu_custom_call.1} parent=11 // pred_check_branch
          %247 = sbr.rel (%p245) target = $region20
        $region19: #{tpu_custom_call.1} parent=11 // pred_region
          %s249 = ssub.s32 1024, 1024
          %250 = vsyncadd [#allocation11], %s249
          %s251 = sshll.u32 [#allocation12], 4
          %s252 = int_to_ptr.vmem [resolvable:$true] %s251
          %257 = dma.hbm_to_vmem [thread:$0]  %s5, 1024, %s252, [#allocation11], 64, 64, 4
        $region20: #{tpu_custom_call.1} parent=11 // pred_fallthru
          _
        // Predicated region
        $region21: #{tpu_custom_call.1} parent=11 // pred_check
          %p258 = pneg %p170
        $region22: #{tpu_custom_call.1} parent=11 // pred_check_branch
          %260 = sbr.rel (%p258) target = $region24
        $region23: #{tpu_custom_call.1} parent=11 // pred_region
          %s262 = ssub.s32 1024, 1024
          %263 = vsyncadd [#allocation14], %s262
          %s264 = sshll.u32 [#allocation13], 4
          %s265 = int_to_ptr.vmem [resolvable:$true] %s264
          %270 = dma.hbm_to_vmem [thread:$0]  %s6, 1024, %s265, [#allocation14], 64, 64, 4
        $region24: #{tpu_custom_call.1} parent=11 // pred_fallthru
          _
        // Predicated region
        $region25: #{tpu_custom_call.1} parent=11 // pred_check
          %p271 = pneg %p191
        $region26: #{tpu_custom_call.1} parent=11 // pred_check_branch
          %273 = sbr.rel (%p271) target = $region28
        $region27: #{tpu_custom_call.1} parent=11 // pred_region
          _
        $region28: #{tpu_custom_call.1} parent=11 // pred_fallthru
          _
      $region12: #{tpu_custom_call.1} parent=5 // pred_fallthru
        _
      %p274 = scmp.lt.s32.totalorder %s29, 4
      // Predicated region
      $region29: #{tpu_custom_call.1} parent=5 // pred_check
        %p275 = pneg %p274
      $region30: #{tpu_custom_call.1} parent=5 // pred_check_branch
        %277 = sbr.rel (%p275) target = $region32
      $region31: #{tpu_custom_call.1} parent=5 // pred_region
        // Predicated region
        $region33: #{tpu_custom_call.1} parent=31 // pred_check
          %p278 = pneg %p49
        $region34: #{tpu_custom_call.1} parent=31 // pred_check_branch
          %280 = sbr.rel (%p278) target = $region36
        $region35: #{tpu_custom_call.1} parent=31 // pred_region
          %s281 = sand.u32 %s39, 1
          %s282 = scalar_lea.sflag [#allocation5], %s281
          %s283 = sand.u32 %s39, 1
          %s284 = smul.addr %s283, 8
          %s285 = scalar_lea.vmem [#allocation4], %s284
          %s287 = ssub.s32 128, 128
          %288 = vsyncadd %s282, %s287
          %s289 = smul.addr %s29, 128
          %s290 = scalar_lea.hbm %s1, %s289
          %s292 = sshll.u32 %s285, 4
          %s293 = int_to_ptr.vmem [resolvable:$true] %s292
          %295 = dma.hbm_to_vmem [thread:$0]  %s290, 128, %s293, %s282
        $region36: #{tpu_custom_call.1} parent=31 // pred_fallthru
          _
        // Predicated region
        $region37: #{tpu_custom_call.1} parent=31 // pred_check
          %p296 = pneg %p75
        $region38: #{tpu_custom_call.1} parent=31 // pred_check_branch
          %298 = sbr.rel (%p296) target = $region40
        $region39: #{tpu_custom_call.1} parent=31 // pred_region
          %s299 = sand.u32 %s29, 1
          %s300 = scalar_lea.sflag [#allocation8], %s299
          %s301 = sand.u32 %s65, 1
          %s302 = smul.addr %s301, 8
          %s303 = scalar_lea.vmem [#allocation7], %s302
          %s305 = ssub.s32 128, 128
          %306 = vsyncadd %s300, %s305
          %s307 = smul.addr %s29, 128
          %s308 = scalar_lea.hbm %s2, %s307
          %s310 = sshll.u32 %s303, 4
          %s311 = int_to_ptr.vmem [resolvable:$true] %s310
          %313 = dma.hbm_to_vmem [thread:$0]  %s308, 128, %s311, %s300
        $region40: #{tpu_custom_call.1} parent=31 // pred_fallthru
          _
        // Predicated region
        $region41: #{tpu_custom_call.1} parent=31 // pred_check
          %p314 = pneg %p101
        $region42: #{tpu_custom_call.1} parent=31 // pred_check_branch
          %316 = sbr.rel (%p314) target = $region44
        $region43: #{tpu_custom_call.1} parent=31 // pred_region
          %s317 = sand.u32 %s29, 1
          %s318 = scalar_lea.sflag [#allocation8], %s317
          %s319 = sand.u32 %s91, 1
          %s320 = smul.addr %s319, 8
          %s321 = scalar_lea.vmem [#allocation9], %s320
          %s323 = ssub.s32 128, 128
          %324 = vsyncadd %s318, %s323
          %s325 = smul.addr %s29, 128
          %s326 = scalar_lea.hbm %s3, %s325
          %s328 = sshll.u32 %s321, 4
          %s329 = int_to_ptr.vmem [resolvable:$true] %s328
          %331 = dma.hbm_to_vmem [thread:$0]  %s326, 128, %s329, %s318
        $region44: #{tpu_custom_call.1} parent=31 // pred_fallthru
          _
      $region32: #{tpu_custom_call.1} parent=5 // pred_fallthru
        _
      %p332 = scmp.le.s32.totalorder 1, %s29
      %p333 = scmp.lt.s32.totalorder %s29, 5
      %p334 = pnand %p332, %p333
      %p335 = pneg %p334
      // Predicated region
      $region45: #{tpu_custom_call.1} parent=5 // pred_check
        _
      $region46: #{tpu_custom_call.1} parent=5 // pred_check_branch
        %337 = sbr.rel (%p334) target = $region48
      $region47: #{tpu_custom_call.1} parent=5 // pred_region
        %s338 = ssub.s32 %s29, 1
        %s339 = sand.u32 %s42, 1
        %s340 = scalar_lea.sflag [#allocation5], %s339
        %s341 = sand.u32 %s42, 1
        %s342 = smul.addr %s341, 8
        %s343 = scalar_lea.vmem [#allocation4], %s342
        // Predicated region
        $region49: #{tpu_custom_call.1} parent=47 // pred_check
          %p344 = pneg %p55
        $region50: #{tpu_custom_call.1} parent=47 // pred_check_branch
          %346 = sbr.rel (%p344) target = $region52
        $region51: #{tpu_custom_call.1} parent=47 // pred_region
          %347 = dma.done %s340, 128
        $region52: #{tpu_custom_call.1} parent=47 // pred_fallthru
          _
        %s348 = sand.u32 %s34, 1
        %s349 = scalar_lea.sflag [#allocation8], %s348
        %s350 = sand.u32 %s68, 1
        %s351 = smul.addr %s350, 8
        %s352 = scalar_lea.vmem [#allocation7], %s351
        // Predicated region
        $region53: #{tpu_custom_call.1} parent=47 // pred_check
          %p353 = pneg %p81
        $region54: #{tpu_custom_call.1} parent=47 // pred_check_branch
          %355 = sbr.rel (%p353) target = $region56
        $region55: #{tpu_custom_call.1} parent=47 // pred_region
          %356 = dma.done %s349, 128
        $region56: #{tpu_custom_call.1} parent=47 // pred_fallthru
          _
        %s357 = sand.u32 %s34, 1
        %s358 = scalar_lea.sflag [#allocation8], %s357
        %s359 = sand.u32 %s94, 1
        %s360 = smul.addr %s359, 8
        %s361 = scalar_lea.vmem [#allocation9], %s360
        // Predicated region
        $region57: #{tpu_custom_call.1} parent=47 // pred_check
          %p362 = pneg %p107
        $region58: #{tpu_custom_call.1} parent=47 // pred_check_branch
          %364 = sbr.rel (%p362) target = $region60
        $region59: #{tpu_custom_call.1} parent=47 // pred_region
          %365 = dma.done %s358, 128
        $region60: #{tpu_custom_call.1} parent=47 // pred_fallthru
          _
        // Predicated region
        $region61: #{tpu_custom_call.1} parent=47 // pred_check
          %p366 = pneg %p128
        $region62: #{tpu_custom_call.1} parent=47 // pred_check_branch
          %368 = sbr.rel (%p366) target = $region64
        $region63: #{tpu_custom_call.1} parent=47 // pred_region
          %369 = dma.done [#allocation11], 1024
        $region64: #{tpu_custom_call.1} parent=47 // pred_fallthru
          _
        // Predicated region
        $region65: #{tpu_custom_call.1} parent=47 // pred_check
          %p370 = pneg %p149
        $region66: #{tpu_custom_call.1} parent=47 // pred_check_branch
          %372 = sbr.rel (%p370) target = $region68
        $region67: #{tpu_custom_call.1} parent=47 // pred_region
          %373 = dma.done [#allocation11], 1024
        $region68: #{tpu_custom_call.1} parent=47 // pred_fallthru
          _
        // Predicated region
        $region69: #{tpu_custom_call.1} parent=47 // pred_check
          %p374 = pneg %p170
        $region70: #{tpu_custom_call.1} parent=47 // pred_check_branch
          %376 = sbr.rel (%p374) target = $region72
        $region71: #{tpu_custom_call.1} parent=47 // pred_region
          %377 = dma.done [#allocation14], 1024
        $region72: #{tpu_custom_call.1} parent=47 // pred_fallthru
          _
        %s378 = sand.u32 %s42, 1
        %s379 = scalar_lea.sflag [#allocation5], %s378
        %s380 = sand.u32 %s42, 1
        %s381 = smul.addr %s380, 8
        %s382 = scalar_lea.vmem [#allocation4], %s381
        %p383 = pneg %p55
        %p384 = pneg %p52
        %s385 = sand.u32 %s34, 1
        %s386 = scalar_lea.sflag [#allocation8], %s385
        %s387 = sand.u32 %s68, 1
        %s388 = smul.addr %s387, 8
        %s389 = scalar_lea.vmem [#allocation7], %s388
        %p390 = pneg %p81
        %p391 = pneg %p78
        %s392 = sand.u32 %s34, 1
        %s393 = scalar_lea.sflag [#allocation8], %s392
        %s394 = sand.u32 %s94, 1
        %s395 = smul.addr %s394, 8
        %s396 = scalar_lea.vmem [#allocation9], %s395
        %p397 = pneg %p107
        %p398 = pneg %p104
        %p399 = pneg %p128
        %p400 = pneg %p125
        %p401 = pneg %p149
        %p402 = pneg %p146
        %p403 = pneg %p170
        %p404 = pneg %p167
        %p405 = pneg %p191
        %p406 = pneg %p188
        %p407 = pneg %p217
        %p408 = pneg %p214
        %s409 = sand.u32 %s204, 1
        %s410 = scalar_lea.sflag [#allocation6], %s409
        %s411 = sand.u32 %s204, 1
        %s412 = smul.addr %s411, 8
        %s413 = scalar_lea.vmem [#allocation15], %s412
        %v415 = vld [vmem:[%s7] sm:$0x1]
        %v416 = vld [vmem:[%s7 + $0x1] sm:$0x1]
        %v417 = vld [vmem:[%s7 + $0x2] sm:$0x1]
        %v418 = vld [vmem:[%s7 + $0x3] sm:$0x1]
        %v419 = vld [vmem:[%s7 + $0x4] sm:$0x1]
        %v420 = vld [vmem:[%s343] sm:$0xff]
        %v421 = vld [vmem:[%s352] sm:$0xff]
        %v422 = vld [vmem:[%s361] sm:$0xff]
        %v423 = vpack.c.bf16 %v420, %v420
        %v424 = vld [vmem:[#allocation10] sm:$0xf]
        %v425 = vld [vmem:[#allocation10 + $0x4] sm:$0xf]
        %v426 = vld [vmem:[#allocation10 + $0x8] sm:$0xf]
        %v427 = vld [vmem:[#allocation10 + $0xc] sm:$0xf]
        %v428 = vld [vmem:[#allocation10 + $0x10] sm:$0xf]
        %v429 = vld [vmem:[#allocation10 + $0x14] sm:$0xf]
        %v430 = vld [vmem:[#allocation10 + $0x18] sm:$0xf]
        %v431 = vld [vmem:[#allocation10 + $0x1c] sm:$0xf]
        %v432 = vld [vmem:[#allocation10 + $0x20] sm:$0xf]
        %v433 = vld [vmem:[#allocation10 + $0x24] sm:$0xf]
        %v434 = vld [vmem:[#allocation10 + $0x28] sm:$0xf]
        %v435 = vld [vmem:[#allocation10 + $0x2c] sm:$0xf]
        %v436 = vld [vmem:[#allocation10 + $0x30] sm:$0xf]
        %v437 = vld [vmem:[#allocation10 + $0x34] sm:$0xf]
        %v438 = vld [vmem:[#allocation10 + $0x38] sm:$0xf]
        %v439 = vld [vmem:[#allocation10 + $0x3c] sm:$0xf]
        %v440 = vlaneseq
        %v441 = vshrl.u32 %v440, 7
        %v442 = vsub.s32 0, %v441
        %v443 = vrot.slane %v415, %v442
        %v460 = vunpack.c.l.b16 %v424
        %v461 = vunpack.c.l.b16 %v425
        %v462 = vunpack.c.l.b16 %v426
        %v463 = vunpack.c.l.b16 %v427
        %v464 = vunpack.c.l.b16 %v428
        %v465 = vunpack.c.l.b16 %v429
        %v466 = vunpack.c.l.b16 %v430
        %v467 = vunpack.c.l.b16 %v431
        %v468 = vunpack.c.l.b16 %v432
        %v469 = vunpack.c.l.b16 %v433
        %v470 = vunpack.c.l.b16 %v434
        %v471 = vunpack.c.l.b16 %v435
        %v472 = vunpack.c.l.b16 %v436
        %v473 = vunpack.c.l.b16 %v437
        %v474 = vunpack.c.l.b16 %v438
        %v475 = vunpack.c.l.b16 %v439
        %v476 = vpack.c.b16 %v461, %v460
        %v477 = vpack.c.b16 %v463, %v462
        %v478 = vpack.c.b16 %v465, %v464
        %v479 = vpack.c.b16 %v467, %v466
        %v480 = vpack.c.b16 %v469, %v468
        %v481 = vpack.c.b16 %v471, %v470
        %v482 = vpack.c.b16 %v473, %v472
        %v483 = vpack.c.b16 %v475, %v474
        %492 = vmatprep.subr.bf16.mxu0 0
        %493 = vmatpush1.bf16.msra.mxu0 %v476
        %494 = vmatprep.subr.bf16.mxu0 0
        %495 = vmatpush1.bf16.msra.mxu0 %v477
        %496 = vmatprep.subr.bf16.mxu0 0
        %497 = vmatpush1.bf16.msra.mxu0 %v478
        %498 = vmatprep.subr.bf16.mxu0 0
        %499 = vmatpush1.bf16.msra.mxu0 %v479
        %500 = vmatprep.subr.bf16.mxu0 0
        %501 = vmatpush1.bf16.msra.mxu0 %v480
        %502 = vmatprep.subr.bf16.mxu0 0
        %503 = vmatpush1.bf16.msra.mxu0 %v481
        %504 = vmatprep.subr.bf16.mxu0 0
        %505 = vmatpush1.bf16.msra.mxu0 %v482
        %506 = vmatprep.subr.bf16.mxu0 0
        %507 = vmatpush1.bf16.msra.mxu0 %v483
        %508 = vmatprep.subr.bf16.mxu0 0
        %509 = vmatpush1.bf16.msra.mxu0 0
        %510 = vmatprep.subr.bf16.mxu0 0
        %511 = vmatpush1.bf16.msra.mxu0 0
        %512 = vmatprep.subr.bf16.mxu0 0
        %513 = vmatpush1.bf16.msra.mxu0 0
        %514 = vmatprep.subr.bf16.mxu0 0
        %515 = vmatpush1.bf16.msra.mxu0 0
        %516 = vmatprep.subr.bf16.mxu0 0
        %517 = vmatpush1.bf16.msra.mxu0 0
        %518 = vmatprep.subr.bf16.mxu0 0
        %519 = vmatpush1.bf16.msra.mxu0 0
        %520 = vmatprep.subr.bf16.mxu0 0
        %521 = vmatpush1.bf16.msra.mxu0 0
        %522 = vmatprep.subr.bf16.mxu0 0
        %523 = vmatpush1.bf16.msra.mxu0 0
        %524 = vmatprep.mubr.bf16.mxu0 0
        %525 = vmatmul.mubr.bf16.gmra.mrb[0].mxu0 %v423
        %v526 = vpop.f32.mrb[0].mxu0
        %v527 = vadd.f32 %v443, %v526
        %v528 = vpop.f32.mrb[0].mxu0
        %v529 = vpop.f32.mrb[0].mxu0
        %v530 = vpop.f32.mrb[0].mxu0
        %531 = vdwg.mxu0
        %v532 = vmax.f32 %v527, 0.0
        %v533 = vpack.c.bf16 %v421, %v421
        %v534 = vld [vmem:[#allocation12] sm:$0xf]
        %v535 = vld [vmem:[#allocation12 + $0x4] sm:$0xf]
        %v536 = vld [vmem:[#allocation12 + $0x8] sm:$0xf]
        %v537 = vld [vmem:[#allocation12 + $0xc] sm:$0xf]
        %v538 = vld [vmem:[#allocation12 + $0x10] sm:$0xf]
        %v539 = vld [vmem:[#allocation12 + $0x14] sm:$0xf]
        %v540 = vld [vmem:[#allocation12 + $0x18] sm:$0xf]
        %v541 = vld [vmem:[#allocation12 + $0x1c] sm:$0xf]
        %v542 = vld [vmem:[#allocation12 + $0x20] sm:$0xf]
        %v543 = vld [vmem:[#allocation12 + $0x24] sm:$0xf]
        %v544 = vld [vmem:[#allocation12 + $0x28] sm:$0xf]
        %v545 = vld [vmem:[#allocation12 + $0x2c] sm:$0xf]
        %v546 = vld [vmem:[#allocation12 + $0x30] sm:$0xf]
        %v547 = vld [vmem:[#allocation12 + $0x34] sm:$0xf]
        %v548 = vld [vmem:[#allocation12 + $0x38] sm:$0xf]
        %v549 = vld [vmem:[#allocation12 + $0x3c] sm:$0xf]
        %v550 = vlaneseq
        %v551 = vshrl.u32 %v550, 7
        %v552 = vsub.s32 0, %v551
        %v553 = vrot.slane %v416, %v552
        %v570 = vunpack.c.l.b16 %v534
        %v571 = vunpack.c.l.b16 %v535
        %v572 = vunpack.c.l.b16 %v536
        %v573 = vunpack.c.l.b16 %v537
        %v574 = vunpack.c.l.b16 %v538
        %v575 = vunpack.c.l.b16 %v539
        %v576 = vunpack.c.l.b16 %v540
        %v577 = vunpack.c.l.b16 %v541
        %v578 = vunpack.c.l.b16 %v542
        %v579 = vunpack.c.l.b16 %v543
        %v580 = vunpack.c.l.b16 %v544
        %v581 = vunpack.c.l.b16 %v545
        %v582 = vunpack.c.l.b16 %v546
        %v583 = vunpack.c.l.b16 %v547
        %v584 = vunpack.c.l.b16 %v548
        %v585 = vunpack.c.l.b16 %v549
        %v586 = vpack.c.b16 %v571, %v570
        %v587 = vpack.c.b16 %v573, %v572
        %v588 = vpack.c.b16 %v575, %v574
        %v589 = vpack.c.b16 %v577, %v576
        %v590 = vpack.c.b16 %v579, %v578
        %v591 = vpack.c.b16 %v581, %v580
        %v592 = vpack.c.b16 %v583, %v582
        %v593 = vpack.c.b16 %v585, %v584
        %602 = vmatprep.subr.bf16.mxu0 0
        %603 = vmatpush1.bf16.msra.mxu0 %v586
        %604 = vmatprep.subr.bf16.mxu0 0
        %605 = vmatpush1.bf16.msra.mxu0 %v587
        %606 = vmatprep.subr.bf16.mxu0 0
        %607 = vmatpush1.bf16.msra.mxu0 %v588
        %608 = vmatprep.subr.bf16.mxu0 0
        %609 = vmatpush1.bf16.msra.mxu0 %v589
        %610 = vmatprep.subr.bf16.mxu0 0
        %611 = vmatpush1.bf16.msra.mxu0 %v590
        %612 = vmatprep.subr.bf16.mxu0 0
        %613 = vmatpush1.bf16.msra.mxu0 %v591
        %614 = vmatprep.subr.bf16.mxu0 0
        %615 = vmatpush1.bf16.msra.mxu0 %v592
        %616 = vmatprep.subr.bf16.mxu0 0
        %617 = vmatpush1.bf16.msra.mxu0 %v593
        %618 = vmatprep.subr.bf16.mxu0 0
        %619 = vmatpush1.bf16.msra.mxu0 0
        %620 = vmatprep.subr.bf16.mxu0 0
        %621 = vmatpush1.bf16.msra.mxu0 0
        %622 = vmatprep.subr.bf16.mxu0 0
        %623 = vmatpush1.bf16.msra.mxu0 0
        %624 = vmatprep.subr.bf16.mxu0 0
        %625 = vmatpush1.bf16.msra.mxu0 0
        %626 = vmatprep.subr.bf16.mxu0 0
        %627 = vmatpush1.bf16.msra.mxu0 0
        %628 = vmatprep.subr.bf16.mxu0 0
        %629 = vmatpush1.bf16.msra.mxu0 0
        %630 = vmatprep.subr.bf16.mxu0 0
        %631 = vmatpush1.bf16.msra.mxu0 0
        %632 = vmatprep.subr.bf16.mxu0 0
        %633 = vmatpush1.bf16.msra.mxu0 0
        %634 = vmatprep.mubr.bf16.mxu0 0
        %635 = vmatmul.mubr.bf16.gmra.mrb[0].mxu0 %v533
        %v636 = vpop.f32.mrb[0].mxu0
        %v637 = vadd.f32 %v553, %v636
        %v638 = vpop.f32.mrb[0].mxu0
        %v639 = vpop.f32.mrb[0].mxu0
        %v640 = vpop.f32.mrb[0].mxu0
        %641 = vdwg.mxu0
        %v642 = vmax.f32 %v637, 0.0
        %v643 = vpack.c.bf16 %v422, %v422
        %v644 = vld [vmem:[#allocation13] sm:$0xf]
        %v645 = vld [vmem:[#allocation13 + $0x4] sm:$0xf]
        %v646 = vld [vmem:[#allocation13 + $0x8] sm:$0xf]
        %v647 = vld [vmem:[#allocation13 + $0xc] sm:$0xf]
        %v648 = vld [vmem:[#allocation13 + $0x10] sm:$0xf]
        %v649 = vld [vmem:[#allocation13 + $0x14] sm:$0xf]
        %v650 = vld [vmem:[#allocation13 + $0x18] sm:$0xf]
        %v651 = vld [vmem:[#allocation13 + $0x1c] sm:$0xf]
        %v652 = vld [vmem:[#allocation13 + $0x20] sm:$0xf]
        %v653 = vld [vmem:[#allocation13 + $0x24] sm:$0xf]
        %v654 = vld [vmem:[#allocation13 + $0x28] sm:$0xf]
        %v655 = vld [vmem:[#allocation13 + $0x2c] sm:$0xf]
        %v656 = vld [vmem:[#allocation13 + $0x30] sm:$0xf]
        %v657 = vld [vmem:[#allocation13 + $0x34] sm:$0xf]
        %v658 = vld [vmem:[#allocation13 + $0x38] sm:$0xf]
        %v659 = vld [vmem:[#allocation13 + $0x3c] sm:$0xf]
        %v660 = vlaneseq
        %v661 = vshrl.u32 %v660, 7
        %v662 = vsub.s32 0, %v661
        %v663 = vrot.slane %v417, %v662
        %v680 = vunpack.c.l.b16 %v644
        %v681 = vunpack.c.l.b16 %v645
        %v682 = vunpack.c.l.b16 %v646
        %v683 = vunpack.c.l.b16 %v647
        %v684 = vunpack.c.l.b16 %v648
        %v685 = vunpack.c.l.b16 %v649
        %v686 = vunpack.c.l.b16 %v650
        %v687 = vunpack.c.l.b16 %v651
        %v688 = vunpack.c.l.b16 %v652
        %v689 = vunpack.c.l.b16 %v653
        %v690 = vunpack.c.l.b16 %v654
        %v691 = vunpack.c.l.b16 %v655
        %v692 = vunpack.c.l.b16 %v656
        %v693 = vunpack.c.l.b16 %v657
        %v694 = vunpack.c.l.b16 %v658
        %v695 = vunpack.c.l.b16 %v659
        %v696 = vpack.c.b16 %v681, %v680
        %v697 = vpack.c.b16 %v683, %v682
        %v698 = vpack.c.b16 %v685, %v684
        %v699 = vpack.c.b16 %v687, %v686
        %v700 = vpack.c.b16 %v689, %v688
        %v701 = vpack.c.b16 %v691, %v690
        %v702 = vpack.c.b16 %v693, %v692
        %v703 = vpack.c.b16 %v695, %v694
        %712 = vmatprep.subr.bf16.mxu0 0
        %713 = vmatpush1.bf16.msra.mxu0 %v696
        %714 = vmatprep.subr.bf16.mxu0 0
        %715 = vmatpush1.bf16.msra.mxu0 %v697
        %716 = vmatprep.subr.bf16.mxu0 0
        %717 = vmatpush1.bf16.msra.mxu0 %v698
        %718 = vmatprep.subr.bf16.mxu0 0
        %719 = vmatpush1.bf16.msra.mxu0 %v699
        %720 = vmatprep.subr.bf16.mxu0 0
        %721 = vmatpush1.bf16.msra.mxu0 %v700
        %722 = vmatprep.subr.bf16.mxu0 0
        %723 = vmatpush1.bf16.msra.mxu0 %v701
        %724 = vmatprep.subr.bf16.mxu0 0
        %725 = vmatpush1.bf16.msra.mxu0 %v702
        %726 = vmatprep.subr.bf16.mxu0 0
        %727 = vmatpush1.bf16.msra.mxu0 %v703
        %728 = vmatprep.subr.bf16.mxu0 0
        %729 = vmatpush1.bf16.msra.mxu0 0
        %730 = vmatprep.subr.bf16.mxu0 0
        %731 = vmatpush1.bf16.msra.mxu0 0
        %732 = vmatprep.subr.bf16.mxu0 0
        %733 = vmatpush1.bf16.msra.mxu0 0
        %734 = vmatprep.subr.bf16.mxu0 0
        %735 = vmatpush1.bf16.msra.mxu0 0
        %736 = vmatprep.subr.bf16.mxu0 0
        %737 = vmatpush1.bf16.msra.mxu0 0
        %738 = vmatprep.subr.bf16.mxu0 0
        %739 = vmatpush1.bf16.msra.mxu0 0
        %740 = vmatprep.subr.bf16.mxu0 0
        %741 = vmatpush1.bf16.msra.mxu0 0
        %742 = vmatprep.subr.bf16.mxu0 0
        %743 = vmatpush1.bf16.msra.mxu0 0
        %744 = vmatprep.mubr.bf16.mxu0 0
        %745 = vmatmul.mubr.bf16.gmra.mrb[0].mxu0 %v643
        %v746 = vpop.f32.mrb[0].mxu0
        %v747 = vadd.f32 %v663, %v746
        %v748 = vpop.f32.mrb[0].mxu0
        %v749 = vpop.f32.mrb[0].mxu0
        %v750 = vpop.f32.mrb[0].mxu0
        %751 = vdwg.mxu0
        %v752 = vmax.f32 %v747, 0.0
        %v753 = vmul.f32 %v532, 0.17677669
        %v754 = vpack.c.bf16 %v642, %v642
        %v755 = vlaneseq
        %v756 = vand.u32 %v755, 127
        %s757 = sld [smem:[#allocation3 + %s34]]
        %v758 = vstv %s757
        %vm759 = vcmp.ge.s32.totalorder %v756, %v758
        %v760 = vsel %vm759, -1e+09, 0.0
        %vm761 = vcmp.ge.s32.totalorder %v756, 0
        %vm762 = vcmp.lt.s32.totalorder %v756, 32
        %vm763 = vmand %vm761, %vm762
        %v764 = vsel %vm763, 1, 0
        %vm765 = vcmp.eq.s32.totalorder %v764, 1
        %v766 = vsel %vm765, %v753, 0.0
        %v767 = vpack.c.bf16 %v766, %v766
        %v768 = vsel %vm765, %v752, 0.0
        %v769 = vpack.c.bf16 %v768, %v768
        %770 = vmatprep.subr.bf16.mxu0 0
        %771 = vmatpush1.bf16.xpose.msra.mxu0 %v754
        %772 = vmatprep.subr.bf16.mxu0 0
        %773 = vmatpush1.bf16.xpose.msra.mxu0 0
        %774 = vmatprep.subr.bf16.mxu0 0
        %775 = vmatpush1.bf16.xpose.msra.mxu0 0
        %776 = vmatprep.subr.bf16.mxu0 0
        %777 = vmatpush1.bf16.xpose.msra.mxu0 0
        %778 = vmatprep.subr.bf16.mxu0 0
        %779 = vmatpush1.bf16.xpose.msra.mxu0 0
        %780 = vmatprep.subr.bf16.mxu0 0
        %781 = vmatpush1.bf16.xpose.msra.mxu0 0
        %782 = vmatprep.subr.bf16.mxu0 0
        %783 = vmatpush1.bf16.xpose.msra.mxu0 0
        %784 = vmatprep.subr.bf16.mxu0 0
        %785 = vmatpush1.bf16.xpose.msra.mxu0 0
        %786 = vmatprep.subr.bf16.mxu0 0
        %787 = vmatpush1.bf16.xpose.msra.mxu0 0
        %788 = vmatprep.subr.bf16.mxu0 0
        %789 = vmatpush1.bf16.xpose.msra.mxu0 0
        %790 = vmatprep.subr.bf16.mxu0 0
        %791 = vmatpush1.bf16.xpose.msra.mxu0 0
        %792 = vmatprep.subr.bf16.mxu0 0
        %793 = vmatpush1.bf16.xpose.msra.mxu0 0
        %794 = vmatprep.subr.bf16.mxu0 0
        %795 = vmatpush1.bf16.xpose.msra.mxu0 0
        %796 = vmatprep.subr.bf16.mxu0 0
        %797 = vmatpush1.bf16.xpose.msra.mxu0 0
        %798 = vmatprep.subr.bf16.mxu0 0
        %799 = vmatpush1.bf16.xpose.msra.mxu0 0
        %800 = vmatprep.subr.bf16.mxu0 0
        %801 = vmatpush1.bf16.xpose.msra.mxu0 0
        %802 = vmatprep.mubr.bf16.mxu0 0
        %803 = vmatmul.mubr.bf16.gmra.mrb[0].mxu0 %v767
        %v804 = vpop.f32.mrb[0].mxu0
        %v805 = vadd.f32 %v760, %v804
        %v806 = vpop.f32.mrb[0].mxu0
        %v807 = vpop.f32.mrb[0].mxu0
        %v808 = vpop.f32.mrb[0].mxu0
        %809 = vdwg.mxu0
        %vm810 = vcmask 64512
        %v811 = vsel %vm810, %v805, -inf
        %812 = vmax.xlane.f32.xlu0 %v811
        %v813 = vpop.xlane.xlu0 %812
        %v814 = vsub.f32 %v805, %v813
        %v815 = vmul.f32 %v814, 1.442695
        %v816 = vpow.pop %v815
        %v817 = vsel %vm810, %v816, 0.0
        %818 = vadd.xlane.f32.xlu0 %v817
        %v819 = vpop.xlane.xlu0 %818
        %v820 = vrcp.pop %v819
        %v821 = vmul.f32 %v816, %v820
        %v822 = vpack.c.bf16 %v821, %v821
        %vm823 = vcmp.ge.s32.totalorder %v756, 32
        %vm824 = vcmp.lt.s32.totalorder %v756, 64
        %vm825 = vmand %vm823, %vm824
        %v826 = vsel %vm825, 1, 0
        %vm827 = vcmp.eq.s32.totalorder %v826, 1
        %v828 = vsel %vm827, %v753, 0.0
        %v829 = vpack.c.bf16 %v828, %v828
        %v830 = vsel %vm827, %v752, 0.0
        %v831 = vpack.c.bf16 %v830, %v830
        %832 = vmatprep.subr.bf16.mxu0 0
        %833 = vmatpush1.bf16.xpose.msra.mxu0 %v754
        %834 = vmatprep.subr.bf16.mxu0 0
        %835 = vmatpush1.bf16.xpose.msra.mxu0 0
        %836 = vmatprep.subr.bf16.mxu0 0
        %837 = vmatpush1.bf16.xpose.msra.mxu0 0
        %838 = vmatprep.subr.bf16.mxu0 0
        %839 = vmatpush1.bf16.xpose.msra.mxu0 0
        %840 = vmatprep.subr.bf16.mxu0 0
        %841 = vmatpush1.bf16.xpose.msra.mxu0 0
        %842 = vmatprep.subr.bf16.mxu0 0
        %843 = vmatpush1.bf16.xpose.msra.mxu0 0
        %844 = vmatprep.subr.bf16.mxu0 0
        %845 = vmatpush1.bf16.xpose.msra.mxu0 0
        %846 = vmatprep.subr.bf16.mxu0 0
        %847 = vmatpush1.bf16.xpose.msra.mxu0 0
        %848 = vmatprep.subr.bf16.mxu0 0
        %849 = vmatpush1.bf16.xpose.msra.mxu0 0
        %850 = vmatprep.subr.bf16.mxu0 0
        %851 = vmatpush1.bf16.xpose.msra.mxu0 0
        %852 = vmatprep.subr.bf16.mxu0 0
        %853 = vmatpush1.bf16.xpose.msra.mxu0 0
        %854 = vmatprep.subr.bf16.mxu0 0
        %855 = vmatpush1.bf16.xpose.msra.mxu0 0
        %856 = vmatprep.subr.bf16.mxu0 0
        %857 = vmatpush1.bf16.xpose.msra.mxu0 0
        %858 = vmatprep.subr.bf16.mxu0 0
        %859 = vmatpush1.bf16.xpose.msra.mxu0 0
        %860 = vmatprep.subr.bf16.mxu0 0
        %861 = vmatpush1.bf16.xpose.msra.mxu0 0
        %862 = vmatprep.subr.bf16.mxu0 0
        %863 = vmatpush1.bf16.xpose.msra.mxu0 0
        %864 = vmatprep.mubr.bf16.mxu0 0
        %865 = vmatmul.mubr.bf16.gmra.mrb[0].mxu0 %v829
        %v866 = vpop.f32.mrb[0].mxu0
        %v867 = vadd.f32 %v760, %v866
        %v868 = vpop.f32.mrb[0].mxu0
        %v869 = vpop.f32.mrb[0].mxu0
        %v870 = vpop.f32.mrb[0].mxu0
        %871 = vdwg.mxu0
        %v872 = vsel %vm810, %v867, -inf
        %873 = vmax.xlane.f32.xlu0 %v872
        %v874 = vpop.xlane.xlu0 %873
        %v875 = vsub.f32 %v867, %v874
        %v876 = vmul.f32 %v875, 1.442695
        %v877 = vpow.pop %v876
        %v878 = vsel %vm810, %v877, 0.0
        %879 = vadd.xlane.f32.xlu0 %v878
        %v880 = vpop.xlane.xlu0 %879
        %v881 = vrcp.pop %v880
        %v882 = vmul.f32 %v877, %v881
        %v883 = vpack.c.bf16 %v882, %v882
        %v885 = vsel %vm810, %v883, 0
        %vm887 = vcmask 1043456
        %v889 = vsel %vm887, %v831, 0
        %891 = vmatprep.subr.bf16.mxu0 0
        %892 = vmatpush1.bf16.msra.mxu0 %v889
        %893 = vmatprep.subr.bf16.mxu0 0
        %894 = vmatpush1.bf16.msra.mxu0 0
        %895 = vmatprep.subr.bf16.mxu0 0
        %896 = vmatpush1.bf16.msra.mxu0 0
        %897 = vmatprep.subr.bf16.mxu0 0
        %898 = vmatpush1.bf16.msra.mxu0 0
        %899 = vmatprep.subr.bf16.mxu0 0
        %900 = vmatpush1.bf16.msra.mxu0 0
        %901 = vmatprep.subr.bf16.mxu0 0
        %902 = vmatpush1.bf16.msra.mxu0 0
        %903 = vmatprep.subr.bf16.mxu0 0
        %904 = vmatpush1.bf16.msra.mxu0 0
        %905 = vmatprep.subr.bf16.mxu0 0
        %906 = vmatpush1.bf16.msra.mxu0 0
        %907 = vmatprep.subr.bf16.mxu0 0
        %908 = vmatpush1.bf16.msra.mxu0 0
        %909 = vmatprep.subr.bf16.mxu0 0
        %910 = vmatpush1.bf16.msra.mxu0 0
        %911 = vmatprep.subr.bf16.mxu0 0
        %912 = vmatpush1.bf16.msra.mxu0 0
        %913 = vmatprep.subr.bf16.mxu0 0
        %914 = vmatpush1.bf16.msra.mxu0 0
        %915 = vmatprep.subr.bf16.mxu0 0
        %916 = vmatpush1.bf16.msra.mxu0 0
        %917 = vmatprep.subr.bf16.mxu0 0
        %918 = vmatpush1.bf16.msra.mxu0 0
        %919 = vmatprep.subr.bf16.mxu0 0
        %920 = vmatpush1.bf16.msra.mxu0 0
        %921 = vmatprep.subr.bf16.mxu0 0
        %922 = vmatpush1.bf16.msra.mxu0 0
        %923 = vmatprep.mubr.bf16.mxu0 0
        %924 = vmatmul.mubr.bf16.gmra.mrb[0].mxu0 %v885
        %v925 = vpop.f32.mrb[0].mxu0
        %v926 = vadd.f32 0.0, %v925
        %v927 = vpop.f32.mrb[0].mxu0
        %v928 = vpop.f32.mrb[0].mxu0
        %v929 = vpop.f32.mrb[0].mxu0
        %930 = vdwg.mxu0
        %v932 = vsel %vm810, %v822, 0
        %v935 = vsel %vm887, %v769, 0
        %937 = vmatprep.subr.bf16.mxu0 0
        %938 = vmatpush1.bf16.msra.mxu0 %v935
        %939 = vmatprep.subr.bf16.mxu0 0
        %940 = vmatpush1.bf16.msra.mxu0 0
        %941 = vmatprep.subr.bf16.mxu0 0
        %942 = vmatpush1.bf16.msra.mxu0 0
        %943 = vmatprep.subr.bf16.mxu0 0
        %944 = vmatpush1.bf16.msra.mxu0 0
        %945 = vmatprep.subr.bf16.mxu0 0
        %946 = vmatpush1.bf16.msra.mxu0 0
        %947 = vmatprep.subr.bf16.mxu0 0
        %948 = vmatpush1.bf16.msra.mxu0 0
        %949 = vmatprep.subr.bf16.mxu0 0
        %950 = vmatpush1.bf16.msra.mxu0 0
        %951 = vmatprep.subr.bf16.mxu0 0
        %952 = vmatpush1.bf16.msra.mxu0 0
        %953 = vmatprep.subr.bf16.mxu0 0
        %954 = vmatpush1.bf16.msra.mxu0 0
        %955 = vmatprep.subr.bf16.mxu0 0
        %956 = vmatpush1.bf16.msra.mxu0 0
        %957 = vmatprep.subr.bf16.mxu0 0
        %958 = vmatpush1.bf16.msra.mxu0 0
        %959 = vmatprep.subr.bf16.mxu0 0
        %960 = vmatpush1.bf16.msra.mxu0 0
        %961 = vmatprep.subr.bf16.mxu0 0
        %962 = vmatpush1.bf16.msra.mxu0 0
        %963 = vmatprep.subr.bf16.mxu0 0
        %964 = vmatpush1.bf16.msra.mxu0 0
        %965 = vmatprep.subr.bf16.mxu0 0
        %966 = vmatpush1.bf16.msra.mxu0 0
        %967 = vmatprep.subr.bf16.mxu0 0
        %968 = vmatpush1.bf16.msra.mxu0 0
        %969 = vmatprep.mubr.bf16.mxu0 0
        %970 = vmatmul.mubr.bf16.gmra.mrb[0].mxu0 %v932
        %v971 = vpop.f32.mrb[0].mxu0
        %v972 = vadd.f32 %v926, %v971
        %v973 = vpop.f32.mrb[0].mxu0
        %v974 = vpop.f32.mrb[0].mxu0
        %v975 = vpop.f32.mrb[0].mxu0
        %976 = vdwg.mxu0
        %vm977 = vcmp.ge.s32.totalorder %v756, 64
        %vm978 = vcmp.lt.s32.totalorder %v756, 96
        %vm979 = vmand %vm977, %vm978
        %v980 = vsel %vm979, 1, 0
        %vm981 = vcmp.eq.s32.totalorder %v980, 1
        %v982 = vsel %vm981, %v753, 0.0
        %v983 = vpack.c.bf16 %v982, %v982
        %v984 = vsel %vm981, %v752, 0.0
        %v985 = vpack.c.bf16 %v984, %v984
        %986 = vmatprep.subr.bf16.mxu0 0
        %987 = vmatpush1.bf16.xpose.msra.mxu0 %v754
        %988 = vmatprep.subr.bf16.mxu0 0
        %989 = vmatpush1.bf16.xpose.msra.mxu0 0
        %990 = vmatprep.subr.bf16.mxu0 0
        %991 = vmatpush1.bf16.xpose.msra.mxu0 0
        %992 = vmatprep.subr.bf16.mxu0 0
        %993 = vmatpush1.bf16.xpose.msra.mxu0 0
        %994 = vmatprep.subr.bf16.mxu0 0
        %995 = vmatpush1.bf16.xpose.msra.mxu0 0
        %996 = vmatprep.subr.bf16.mxu0 0
        %997 = vmatpush1.bf16.xpose.msra.mxu0 0
        %998 = vmatprep.subr.bf16.mxu0 0
        %999 = vmatpush1.bf16.xpose.msra.mxu0 0
        %1000 = vmatprep.subr.bf16.mxu0 0
        %1001 = vmatpush1.bf16.xpose.msra.mxu0 0
        %1002 = vmatprep.subr.bf16.mxu0 0
        %1003 = vmatpush1.bf16.xpose.msra.mxu0 0
        %1004 = vmatprep.subr.bf16.mxu0 0
        %1005 = vmatpush1.bf16.xpose.msra.mxu0 0
        %1006 = vmatprep.subr.bf16.mxu0 0
        %1007 = vmatpush1.bf16.xpose.msra.mxu0 0
        %1008 = vmatprep.subr.bf16.mxu0 0
        %1009 = vmatpush1.bf16.xpose.msra.mxu0 0
        %1010 = vmatprep.subr.bf16.mxu0 0
        %1011 = vmatpush1.bf16.xpose.msra.mxu0 0
        %1012 = vmatprep.subr.bf16.mxu0 0
        %1013 = vmatpush1.bf16.xpose.msra.mxu0 0
        %1014 = vmatprep.subr.bf16.mxu0 0
        %1015 = vmatpush1.bf16.xpose.msra.mxu0 0
        %1016 = vmatprep.subr.bf16.mxu0 0
        %1017 = vmatpush1.bf16.xpose.msra.mxu0 0
        %1018 = vmatprep.mubr.bf16.mxu0 0
        %1019 = vmatmul.mubr.bf16.gmra.mrb[0].mxu0 %v983
        %v1020 = vpop.f32.mrb[0].mxu0
        %v1021 = vadd.f32 %v760, %v1020
        %v1022 = vpop.f32.mrb[0].mxu0
        %v1023 = vpop.f32.mrb[0].mxu0
        %v1024 = vpop.f32.mrb[0].mxu0
        %1025 = vdwg.mxu0
        %v1026 = vsel %vm810, %v1021, -inf
        %1027 = vmax.xlane.f32.xlu0 %v1026
        %v1028 = vpop.xlane.xlu0 %1027
        %v1029 = vsub.f32 %v1021, %v1028
        %v1030 = vmul.f32 %v1029, 1.442695
        %v1031 = vpow.pop %v1030
        %v1032 = vsel %vm810, %v1031, 0.0
        %1033 = vadd.xlane.f32.xlu0 %v1032
        %v1034 = vpop.xlane.xlu0 %1033
        %v1035 = vrcp.pop %v1034
        %v1036 = vmul.f32 %v1031, %v1035
        %v1037 = vpack.c.bf16 %v1036, %v1036
        %v1039 = vsel %vm810, %v1037, 0
        %v1042 = vsel %vm887, %v985, 0
        %1044 = vmatprep.subr.bf16.mxu0 0
        %1045 = vmatpush1.bf16.msra.mxu0 %v1042
        %1046 = vmatprep.subr.bf16.mxu0 0
        %1047 = vmatpush1.bf16.msra.mxu0 0
        %1048 = vmatprep.subr.bf16.mxu0 0
        %1049 = vmatpush1.bf16.msra.mxu0 0
        %1050 = vmatprep.subr.bf16.mxu0 0
        %1051 = vmatpush1.bf16.msra.mxu0 0
        %1052 = vmatprep.subr.bf16.mxu0 0
        %1053 = vmatpush1.bf16.msra.mxu0 0
        %1054 = vmatprep.subr.bf16.mxu0 0
        %1055 = vmatpush1.bf16.msra.mxu0 0
        %1056 = vmatprep.subr.bf16.mxu0 0
        %1057 = vmatpush1.bf16.msra.mxu0 0
        %1058 = vmatprep.subr.bf16.mxu0 0
        %1059 = vmatpush1.bf16.msra.mxu0 0
        %1060 = vmatprep.subr.bf16.mxu0 0
        %1061 = vmatpush1.bf16.msra.mxu0 0
        %1062 = vmatprep.subr.bf16.mxu0 0
        %1063 = vmatpush1.bf16.msra.mxu0 0
        %1064 = vmatprep.subr.bf16.mxu0 0
        %1065 = vmatpush1.bf16.msra.mxu0 0
        %1066 = vmatprep.subr.bf16.mxu0 0
        %1067 = vmatpush1.bf16.msra.mxu0 0
        %1068 = vmatprep.subr.bf16.mxu0 0
        %1069 = vmatpush1.bf16.msra.mxu0 0
        %1070 = vmatprep.subr.bf16.mxu0 0
        %1071 = vmatpush1.bf16.msra.mxu0 0
        %1072 = vmatprep.subr.bf16.mxu0 0
        %1073 = vmatpush1.bf16.msra.mxu0 0
        %1074 = vmatprep.subr.bf16.mxu0 0
        %1075 = vmatpush1.bf16.msra.mxu0 0
        %1076 = vmatprep.mubr.bf16.mxu0 0
        %1077 = vmatmul.mubr.bf16.gmra.mrb[0].mxu0 %v1039
        %v1078 = vpop.f32.mrb[0].mxu0
        %v1079 = vadd.f32 0.0, %v1078
        %v1080 = vpop.f32.mrb[0].mxu0
        %v1081 = vpop.f32.mrb[0].mxu0
        %v1082 = vpop.f32.mrb[0].mxu0
        %1083 = vdwg.mxu0
        %v1084 = vadd.f32 %v972, %v1079
        %vm1085 = vcmp.ge.s32.totalorder %v756, 96
        %vm1086 = vcmp.lt.s32.totalorder %v756, 128
        %vm1087 = vmand %vm1085, %vm1086
        %v1088 = vsel %vm1087, 1, 0
        %vm1089 = vcmp.eq.s32.totalorder %v1088, 1
        %v1090 = vsel %vm1089, %v753, 0.0
        %v1091 = vpack.c.bf16 %v1090, %v1090
        %v1092 = vsel %vm1089, %v752, 0.0
        %v1093 = vpack.c.bf16 %v1092, %v1092
        %1094 = vmatprep.subr.bf16.mxu0 0
        %1095 = vmatpush1.bf16.xpose.msra.mxu0 %v754
        %1096 = vmatprep.subr.bf16.mxu0 0
        %1097 = vmatpush1.bf16.xpose.msra.mxu0 0
        %1098 = vmatprep.subr.bf16.mxu0 0
        %1099 = vmatpush1.bf16.xpose.msra.mxu0 0
        %1100 = vmatprep.subr.bf16.mxu0 0
        %1101 = vmatpush1.bf16.xpose.msra.mxu0 0
        %1102 = vmatprep.subr.bf16.mxu0 0
        %1103 = vmatpush1.bf16.xpose.msra.mxu0 0
        %1104 = vmatprep.subr.bf16.mxu0 0
        %1105 = vmatpush1.bf16.xpose.msra.mxu0 0
        %1106 = vmatprep.subr.bf16.mxu0 0
        %1107 = vmatpush1.bf16.xpose.msra.mxu0 0
        %1108 = vmatprep.subr.bf16.mxu0 0
        %1109 = vmatpush1.bf16.xpose.msra.mxu0 0
        %1110 = vmatprep.subr.bf16.mxu0 0
        %1111 = vmatpush1.bf16.xpose.msra.mxu0 0
        %1112 = vmatprep.subr.bf16.mxu0 0
        %1113 = vmatpush1.bf16.xpose.msra.mxu0 0
        %1114 = vmatprep.subr.bf16.mxu0 0
        %1115 = vmatpush1.bf16.xpose.msra.mxu0 0
        %1116 = vmatprep.subr.bf16.mxu0 0
        %1117 = vmatpush1.bf16.xpose.msra.mxu0 0
        %1118 = vmatprep.subr.bf16.mxu0 0
        %1119 = vmatpush1.bf16.xpose.msra.mxu0 0
        %1120 = vmatprep.subr.bf16.mxu0 0
        %1121 = vmatpush1.bf16.xpose.msra.mxu0 0
        %1122 = vmatprep.subr.bf16.mxu0 0
        %1123 = vmatpush1.bf16.xpose.msra.mxu0 0
        %1124 = vmatprep.subr.bf16.mxu0 0
        %1125 = vmatpush1.bf16.xpose.msra.mxu0 0
        %1126 = vmatprep.mubr.bf16.mxu0 0
        %1127 = vmatmul.mubr.bf16.gmra.mrb[0].mxu0 %v1091
        %v1128 = vpop.f32.mrb[0].mxu0
        %v1129 = vadd.f32 %v760, %v1128
        %v1130 = vpop.f32.mrb[0].mxu0
        %v1131 = vpop.f32.mrb[0].mxu0
        %v1132 = vpop.f32.mrb[0].mxu0
        %1133 = vdwg.mxu0
        %v1134 = vsel %vm810, %v1129, -inf
        %1135 = vmax.xlane.f32.xlu0 %v1134
        %v1136 = vpop.xlane.xlu0 %1135
        %v1137 = vsub.f32 %v1129, %v1136
        %v1138 = vmul.f32 %v1137, 1.442695
        %v1139 = vpow.pop %v1138
        %v1140 = vsel %vm810, %v1139, 0.0
        %1141 = vadd.xlane.f32.xlu0 %v1140
        %v1142 = vpop.xlane.xlu0 %1141
        %v1143 = vrcp.pop %v1142
        %v1144 = vmul.f32 %v1139, %v1143
        %v1145 = vpack.c.bf16 %v1144, %v1144
        %v1147 = vsel %vm810, %v1145, 0
        %v1150 = vsel %vm887, %v1093, 0
        %1152 = vmatprep.subr.bf16.mxu0 0
        %1153 = vmatpush1.bf16.msra.mxu0 %v1150
        %1154 = vmatprep.subr.bf16.mxu0 0
        %1155 = vmatpush1.bf16.msra.mxu0 0
        %1156 = vmatprep.subr.bf16.mxu0 0
        %1157 = vmatpush1.bf16.msra.mxu0 0
        %1158 = vmatprep.subr.bf16.mxu0 0
        %1159 = vmatpush1.bf16.msra.mxu0 0
        %1160 = vmatprep.subr.bf16.mxu0 0
        %1161 = vmatpush1.bf16.msra.mxu0 0
        %1162 = vmatprep.subr.bf16.mxu0 0
        %1163 = vmatpush1.bf16.msra.mxu0 0
        %1164 = vmatprep.subr.bf16.mxu0 0
        %1165 = vmatpush1.bf16.msra.mxu0 0
        %1166 = vmatprep.subr.bf16.mxu0 0
        %1167 = vmatpush1.bf16.msra.mxu0 0
        %1168 = vmatprep.subr.bf16.mxu0 0
        %1169 = vmatpush1.bf16.msra.mxu0 0
        %1170 = vmatprep.subr.bf16.mxu0 0
        %1171 = vmatpush1.bf16.msra.mxu0 0
        %1172 = vmatprep.subr.bf16.mxu0 0
        %1173 = vmatpush1.bf16.msra.mxu0 0
        %1174 = vmatprep.subr.bf16.mxu0 0
        %1175 = vmatpush1.bf16.msra.mxu0 0
        %1176 = vmatprep.subr.bf16.mxu0 0
        %1177 = vmatpush1.bf16.msra.mxu0 0
        %1178 = vmatprep.subr.bf16.mxu0 0
        %1179 = vmatpush1.bf16.msra.mxu0 0
        %1180 = vmatprep.subr.bf16.mxu0 0
        %1181 = vmatpush1.bf16.msra.mxu0 0
        %1182 = vmatprep.subr.bf16.mxu0 0
        %1183 = vmatpush1.bf16.msra.mxu0 0
        %1184 = vmatprep.mubr.bf16.mxu0 0
        %1185 = vmatmul.mubr.bf16.gmra.mrb[0].mxu0 %v1147
        %v1186 = vpop.f32.mrb[0].mxu0
        %v1187 = vadd.f32 0.0, %v1186
        %v1188 = vpop.f32.mrb[0].mxu0
        %v1189 = vpop.f32.mrb[0].mxu0
        %v1190 = vpop.f32.mrb[0].mxu0
        %1191 = vdwg.mxu0
        %v1192 = vadd.f32 %v1084, %v1187
        %v1193 = vadd.f32 %v1192, %v420
        %1194 = vadd.xlane.f32.xlu0 %v1193
        %v1195 = vpop.xlane.xlu0 %1194
        %v1196 = vrcp.pop 128.0
        %v1197 = vmul.f32 %v1195, %v1196
        %v1198 = vsub.f32 %v1193, %v1197
        %v1199 = vmul.f32 %v1198, %v1198
        %1200 = vadd.xlane.f32.xlu0 %v1199
        %v1201 = vpop.xlane.xlu0 %1200
        %v1202 = vmul.f32 %v1201, %v1196
        %v1203 = vadd.f32 %v1202, 1e-05
        %v1204 = vrsqrt.pop %v1203
        %v1205 = vmul.f32 %v1198, %v1204
        %v1206 = vlaneseq
        %v1207 = vshrl.u32 %v1206, 7
        %v1208 = vsub.s32 0, %v1207
        %v1209 = vrot.slane %v418, %v1208
        %v1210 = vmul.f32 %v1205, %v1209
        %v1211 = vlaneseq
        %v1212 = vshrl.u32 %v1211, 7
        %v1213 = vsub.s32 0, %v1212
        %v1214 = vrot.slane %v419, %v1213
        %v1215 = vadd.f32 %v1210, %v1214
        %1216 = vst [vmem:[%s413] sm:$0xff] %v1215
        %s1217 = sand.u32 %s204, 1
        %s1218 = scalar_lea.sflag [#allocation6], %s1217
        %s1219 = sand.u32 %s204, 1
        %s1220 = smul.addr %s1219, 8
        %s1221 = scalar_lea.vmem [#allocation15], %s1220
        // Predicated region
        $region73: #{tpu_custom_call.1} parent=47 // pred_check
          %p1222 = pneg %p214
        $region74: #{tpu_custom_call.1} parent=47 // pred_check_branch
          %1224 = sbr.rel (%p1222) target = $region76
        $region75: #{tpu_custom_call.1} parent=47 // pred_region
          %s1226 = ssub.s32 128, 128
          %1227 = vsyncadd %s1218, %s1226
          %s1228 = smul.addr %s34, 128
          %s1229 = scalar_lea.hbm %s8, %s1228
          %s1231 = sshll.u32 %s1221, 4
          %s1232 = int_to_ptr.vmem [resolvable:$true] %s1231
          %1234 = dma.vmem_to_hbm [thread:$0]  %s1232, 128, %s1229, %s1218
        $region76: #{tpu_custom_call.1} parent=47 // pred_fallthru
          _
      $region48: #{tpu_custom_call.1} parent=5 // pred_fallthru
        _
      %p1235 = scmp.le.s32.totalorder 2, %s29
      // Predicated region
      $region77: #{tpu_custom_call.1} parent=5 // pred_check
        %p1236 = pneg %p1235
      $region78: #{tpu_custom_call.1} parent=5 // pred_check_branch
        %1238 = sbr.rel (%p1236) target = $region80
      $region79: #{tpu_custom_call.1} parent=5 // pred_region
        %s1239 = ssub.s32 %s29, 2
        // Predicated region
        $region81: #{tpu_custom_call.1} parent=79 // pred_check
          %p1240 = pneg %p220
        $region82: #{tpu_custom_call.1} parent=79 // pred_check_branch
          %1242 = sbr.rel (%p1240) target = $region84
        $region83: #{tpu_custom_call.1} parent=79 // pred_region
          %s1243 = sand.u32 %s205, 1
          %s1244 = scalar_lea.sflag [#allocation6], %s1243
          %s1245 = sand.u32 %s205, 1
          %s1246 = smul.addr %s1245, 8
          %s1247 = scalar_lea.vmem [#allocation15], %s1246
          %1248 = dma.done %s1244, 128
        $region84: #{tpu_custom_call.1} parent=79 // pred_fallthru
          _
      $region80: #{tpu_custom_call.1} parent=5 // pred_fallthru
        _
    $region6: #{tpu_custom_call.1} parent=1 // loop_footer
      %s33 = sadd.s32 1, %s29
    $region7: #{tpu_custom_call.1} parent=1 // loop_footer_branch
      %28 = sbr.rel target = $region3
    $region8: #{tpu_custom_call.1} parent=1 // loop_exit
      _
    %1249 = vsyncpa [#allocation5], 1
    %s1250 = scalar_lea.sflag [#allocation5], 1
    %1251 = vsyncpa %s1250, 1
    %1252 = vsyncpa [#allocation8], 1
    %s1253 = scalar_lea.sflag [#allocation8], 1
    %1254 = vsyncpa %s1253, 1
    %1255 = vsyncpa [#allocation11], 1
    %1256 = vsyncpa [#allocation14], 1
    %1257 = vsyncpa [#allocation6], 1
    %s1258 = scalar_lea.sflag [#allocation6], 1
    %1259 = vsyncpa %s1258, 1

</llo_original>
